<compile_context>
chip_gen: v7x
topology: tpu7x:2x2x1
jax: 0.10.0
libtpu: 0.0.40
codegen_flags: <defaults>
</compile_context>

<pallas_src>
import functools

import jax
import jax.numpy as jnp
from jax import lax
from jax.experimental import pallas as pl
from jax.experimental.pallas import tpu as pltpu


def _round_up(x, m):
    return (x + m - 1) // m * m


def _device_kind():
    try:
        return jax.devices()[0].device_kind.lower()
    except Exception:
        return ""


def _exp_in_bf16():
    """bf16 transcendentals only pay off on chips with a bf16 EUP/VPU
    (v6e / v7x).  v5e and older keep f32 exp (they are MXU-bound anyway)."""
    kind = _device_kind()
    if not kind:
        return False
    for tag in ("v2", "v3", "v4", "v5"):
        if tag in kind:
            return False
    return True


def _vmem_limit_bytes():
    """Cap scoped VMEM with headroom below physical capacity (compiler
    internal scratch, semaphores, softmax temporaries)."""
    try:
        cap = int(pltpu.get_tpu_info().vmem_capacity_bytes)
    except Exception:
        kind = _device_kind()
        cap = (64 * 1024 * 1024 if ("v7" in kind or "7x" in kind)
               else 128 * 1024 * 1024)
    return max(min(int(cap * 0.78), 100 * 1024 * 1024), 16 * 1024 * 1024)


def _self_attention_kernel(x_bf_ref, x_tile_ref, w_kv_ref, b_kv_ref,
                           w_q_ref, b_q_ref, gamma_ref, o_ref,
                           k_scr, v_scr, *, slab, cq_pad, exp_bf16):
    """Grid = (B, N // TQ): one batch per grid row, one query tile per step.

    Refs:
      x_bf_ref:   (1, N, C_pad)           bf16 per-batch activations (K|V proj)
      x_tile_ref: (1, TQ, C_pad)          f32  per-tile activations (Q + residual)
      w_kv_ref:   (C_pad, Cq_pad + C_pad) bf16 fused k|v weight
      b_kv_ref:   (1, Cq_pad + C_pad)     f32  fused k|v bias
      w_q_ref:    (C_pad, Cq_pad)         bf16 q weight
      b_q_ref:    (1, Cq_pad)             f32  q bias
      gamma_ref:  (1, 1)                  f32  scalar in SMEM
      o_ref:      (1, TQ, C_pad)          f32  output tile
      k_scr:      (N, Cq_pad) bf16 \ per-batch K/V (filled at qi == 0)
      v_scr:      (N, C_pad)  bf16 /
    """
    qi = pl.program_id(1)

    # ---- once per batch: chunked lane-dense K|V projection into VMEM -------
    @pl.when(qi == 0)
    def _():
        w_kv = w_kv_ref[...]
        b_kv = b_kv_ref[...]
        n_slabs = k_scr.shape[0] // slab

        def body(s, carry):
            r0 = pl.multiple_of(s * slab, slab)
            xs = x_bf_ref[0, pl.ds(r0, slab), :]            # (slab, C_pad) bf16
            kv = jnp.dot(xs, w_kv, preferred_element_type=jnp.float32) + b_kv
            kv = jnp.maximum(kv, 0.0).astype(jnp.bfloat16)  # (slab, Dkv)
            k_scr[pl.ds(r0, slab), :] = kv[:, :cq_pad]
            v_scr[pl.ds(r0, slab), :] = kv[:, cq_pad:]
            return carry

        lax.fori_loop(0, n_slabs, body, 0)

    # ---- per query tile -----------------------------------------------------
    x_tile = x_tile_ref[0]                                  # (TQ, C_pad) f32
    q = jnp.dot(x_tile.astype(jnp.bfloat16), w_q_ref[...],
                preferred_element_type=jnp.float32) + b_q_ref[...]
    q = jnp.maximum(q, 0.0).astype(jnp.bfloat16)            # (TQ, Cq_pad)

    # energy[i, j] = <q_i, k_j>; contract last dims of both (no k.T transpose).
    energy = lax.dot_general(
        q, k_scr[...],
        dimension_numbers=(((1,), (1,)), ((), ())),
        preferred_element_type=jnp.float32)                 # (TQ, N) f32

    # Numerically-stable softmax over positions; EUP reciprocal for the denom.
    m = jnp.max(energy, axis=-1, keepdims=True)
    if exp_bf16:
        # v6e/v7x: bf16 exp (EUP is the near-saturating slot); row max, row
        # sum and reciprocal stay in f32.
        p = jnp.exp((energy - m).astype(jnp.bfloat16))                    # bf16
        denom = jnp.sum(p.astype(jnp.float32), axis=-1, keepdims=True)
        inv = pl.reciprocal(denom, approx=True)
        attn = p * inv.astype(jnp.bfloat16)                               # bf16
    else:
        p = jnp.exp(energy - m)                                           # f32
        denom = jnp.sum(p, axis=-1, keepdims=True)
        inv = pl.reciprocal(denom, approx=True)
        attn = (p * inv).astype(jnp.bfloat16)

    # TODO(synk): for very large N (>= ~8K positions) replace this block with
    # a flash-style running-max/sum loop over K/V chunks so the (TQ, N) f32
    # energy never materializes (required for 128x128 images on v7x).
    out = jnp.dot(attn, v_scr[...], preferred_element_type=jnp.float32)

    o_ref[0] = gamma_ref[0, 0] * out + x_tile               # f32 residual


def self_attention_block(x_nchw, params, *, tq=256, kv_slab=512):
    """x_nchw: (B, C, H, W) float32. Returns (B, C, H, W) float32."""
    wq, bq, wk, bk, wv, bv, gamma = params
    b, c, h, w = x_nchw.shape
    n = h * w
    cq = c // 8
    assert cq >= 1, "in_channel must be >= 8"

    c_pad = _round_up(c, 128)
    cq_pad = _round_up(cq, 128)
    dkv_pad = cq_pad + c_pad

    tq = min(tq, n)
    assert n % tq == 0 and tq % 8 == 0, "query tile must divide N, 8-aligned"
    slab = min(kv_slab, n)
    assert n % slab == 0 and slab % 8 == 0, "K/V slab must divide N, 8-aligned"

    # Fused, zero-padded k|v weight/bias (lane-dense MXU output). Zero padding
    # keeps semantics exact: padded input channels of x are zero and padded
    # output channels produce zeros (relu(0)=0) that drop out of the
    # contractions and are sliced away at the end.
    w_kv = jnp.zeros((c_pad, dkv_pad), jnp.float32)
    w_kv = w_kv.at[:c, :cq].set(wk)
    w_kv = w_kv.at[:c, cq_pad:cq_pad + c].set(wv)
    w_kv = w_kv.astype(jnp.bfloat16)                       # bf16 MXU inputs
    b_kv = jnp.zeros((1, dkv_pad), jnp.float32)
    b_kv = b_kv.at[:, :cq].set(bk)
    b_kv = b_kv.at[:, cq_pad:cq_pad + c].set(bv)

    w_q_pad = jnp.zeros((c_pad, cq_pad), jnp.float32).at[:c, :cq].set(wq)
    w_q_pad = w_q_pad.astype(jnp.bfloat16)
    b_q_pad = jnp.zeros((1, cq_pad), jnp.float32).at[:, :cq].set(bq)

    # NCHW -> channels-last tokens (B, N, C_pad); lane dim zero-padded to 128.
    # TODO(synk): the NCHW<->(B,N,C) relayout (and the f32/bf16 split) is still
    # done by XLA outside the kernel; folding it into the producing/consuming
    # op or doing an in-kernel XLU transpose would save an HBM round trip.
    x_bnc = jnp.transpose(x_nchw.reshape(b, c, n), (0, 2, 1)).astype(jnp.float32)
    x_bnc = jnp.pad(x_bnc, ((0, 0), (0, 0), (0, c_pad - c)))
    x_bf = x_bnc.astype(jnp.bfloat16)   # projection input: half the VMEM/DMA

    kernel = functools.partial(_self_attention_kernel, slab=slab,
                               cq_pad=cq_pad, exp_bf16=_exp_in_bf16())

    def run(weight_mode):
        def const_spec(shape):
            # Operands whose block index never changes: single-buffer if the
            # installed Pallas supports it (saves one weight-sized buffer).
            if weight_mode is None:
                return pl.BlockSpec(shape, lambda bi, qi: (0, 0))
            return pl.BlockSpec(shape, lambda bi, qi: (0, 0),
                                pipeline_mode=weight_mode)

        return pl.pallas_call(
            kernel,
            out_shape=jax.ShapeDtypeStruct((b, n, c_pad), jnp.float32),
            grid=(b, n // tq),
            in_specs=[
                pl.BlockSpec((1, n, c_pad), lambda bi, qi: (bi, 0, 0)),    # x bf16 (full)
                pl.BlockSpec((1, tq, c_pad), lambda bi, qi: (bi, qi, 0)),  # x f32 (tile)
                const_spec((c_pad, dkv_pad)),                              # W_kv
                const_spec((1, dkv_pad)),                                  # b_kv
                const_spec((c_pad, cq_pad)),                               # W_q
                const_spec((1, cq_pad)),                                   # b_q
                pl.BlockSpec(memory_space=pltpu.MemorySpace.SMEM),         # gamma
            ],
            out_specs=pl.BlockSpec((1, tq, c_pad), lambda bi, qi: (bi, qi, 0)),
            scratch_shapes=[
                pltpu.VMEM((n, cq_pad), jnp.bfloat16),    # K (all positions)
                pltpu.VMEM((n, c_pad), jnp.bfloat16),     # V (all positions)
            ],
            compiler_params=pltpu.CompilerParams(
                # Batch axis parallel (megacore sharding); query axis
                # "arbitrary" because the per-batch K/V scratch is filled at
                # qi == 0 and reused by later query tiles of the same batch.
                # TODO(synk): for v7x small-batch, precompute K/V in a separate
                # pallas_call so the query axis can also be core-parallel.
                dimension_semantics=("parallel", "arbitrary"),
                vmem_limit_bytes=_vmem_limit_bytes(),
            ),
        )(x_bf, x_bnc, w_kv, b_kv, w_q_pad, b_q_pad, gamma)

    weight_mode = None
    buffered = getattr(pl, "Buffered", None)
    if buffered is not None:
        try:
            weight_mode = buffered(1)
        except Exception:
            weight_mode = None
    try:
        out = run(weight_mode)
    except Exception:
        if weight_mode is None:
            raise
        out = run(None)   # fall back to default double buffering

    out = out[:, :, :c]
    return jnp.transpose(out, (0, 2, 1)).reshape(b, c, h, w)


def reference_f32(x_nchw, params):
    """Pure-JAX f32 reference with the PyTorch module's exact semantics."""
    wq, bq, wk, bk, wv, bv, gamma = params
    b, c, h, w = x_nchw.shape
    n = h * w
    x_bnc = jnp.transpose(x_nchw.reshape(b, c, n), (0, 2, 1))
    hi = lax.Precision.HIGHEST
    q = jax.nn.relu(jnp.einsum('bnc,cd->bnd', x_bnc, wq, precision=hi) + bq)
    k = jax.nn.relu(jnp.einsum('bnc,cd->bnd', x_bnc, wk, precision=hi) + bk)
    v = jax.nn.relu(jnp.einsum('bnc,cd->bnd', x_bnc, wv, precision=hi) + bv)
    energy = jnp.einsum('bic,bjc->bij', q, k, precision=hi)
    attn = jax.nn.softmax(energy, axis=-1)
    out = jnp.einsum('bij,bjc->bic', attn, v, precision=hi)
    out = gamma[0, 0] * out + x_bnc
    return jnp.transpose(out, (0, 2, 1)).reshape(b, c, h, w)


def reference_matched(x_nchw, params, exp_bf16):
    """Pure-JAX reference mirroring the kernel's mixed precision
    (bf16 matmul inputs, f32 accumulation, optional bf16 exp, f32 residual)."""
    wq, bq, wk, bk, wv, bv, gamma = params
    b, c, h, w = x_nchw.shape
    n = h * w
    x_bnc = jnp.transpose(x_nchw.reshape(b, c, n), (0, 2, 1)).astype(jnp.float32)
    xb = x_bnc.astype(jnp.bfloat16).astype(jnp.float32)

    def proj(wm, bias):
        wb = wm.astype(jnp.bfloat16).astype(jnp.float32)
        y = jnp.einsum('bnc,cd->bnd', xb, wb) + bias
        return jnp.maximum(y, 0.0).astype(jnp.bfloat16).astype(jnp.float32)

    q = proj(wq, bq)
    k = proj(wk, bk)
    v = proj(wv, bv)
    energy = jnp.einsum('bic,bjc->bij', q, k)
    m = jnp.max(energy, axis=-1, keepdims=True)
    if exp_bf16:
        p = jnp.exp((energy - m).astype(jnp.bfloat16)).astype(jnp.float32)
        inv = 1.0 / jnp.sum(p, axis=-1, keepdims=True)
        attn = (p.astype(jnp.bfloat16) *
                inv.astype(jnp.bfloat16)).astype(jnp.float32)
    else:
        p = jnp.exp(energy - m)
        attn = (p / jnp.sum(p, axis=-1, keepdims=True))
        attn = attn.astype(jnp.bfloat16).astype(jnp.float32)
    out = jnp.einsum('bij,bjc->bic', attn, v)
    out = gamma[0, 0] * out + x_bnc
    return jnp.transpose(out, (0, 2, 1)).reshape(b, c, h, w)


def init_params(key, c):
    """Deterministic parameter init. Weights stored as (C_in, C_out) matrices,
    i.e. the transpose of the torch 1x1-conv weight (out, in, 1, 1)."""
    cq = c // 8
    k1, k2, k3, k4, k5, k6, kx = jax.random.split(key, 7)
    scale = 1.0 / jnp.sqrt(c)
    wq = jax.random.normal(k1, (c, cq), jnp.float32) * scale
    bq = jax.random.normal(k2, (1, cq), jnp.float32) * 0.1
    wk = jax.random.normal(k3, (c, cq), jnp.float32) * scale
    bk = jax.random.normal(k4, (1, cq), jnp.float32) * 0.1
    wv = jax.random.normal(k5, (c, c), jnp.float32) * scale
    bv = jax.random.normal(k6, (1, c), jnp.float32) * 0.1
    # torch initializes gamma to 0 (which would make out == x); use a nonzero
    # deterministic value so the attention path is actually exercised.
    gamma = jnp.full((1, 1), 0.5, dtype=jnp.float32)
    return (wq, bq, wk, bk, wv, bv, gamma), kx


if __name__ == "__main__":
    B, C, H, W = 2, 32, 16, 16    # C divisible by 8 (Cq = C // 8 = 4); N = 256
    key = jax.random.PRNGKey(0)
    params, key = init_params(key, C)
    x = jax.random.normal(key, (B, C, H, W), jnp.float32)

    # tq=64 -> 4 query tiles per batch; kv_slab=128 -> 2 projection slabs.
    out = self_attention_block(x, params, tq=64, kv_slab=128)
    out = jax.block_until_ready(out)
    assert out.shape == (B, C, H, W)

    # Check vs. a reference mirroring the kernel's precision choices (slack
    # covers the approx EUP reciprocal, EUP-vs-XLA bf16 exp ULP differences,
    # and accumulation-order differences).
    ref_m = reference_matched(x, params, _exp_in_bf16())
    assert jnp.allclose(out, ref_m, atol=1.5e-2, rtol=1.5e-2), \
        "mismatch vs matched-precision JAX reference"

    # Looser check vs. the faithful f32 PyTorch-semantics reference (slack
    # covers bf16 MXU inputs and the optional bf16 softmax numerator).
    ref_f = reference_f32(x, params)
    assert jnp.allclose(out, ref_f, atol=6e-2, rtol=6e-2), \
        "mismatch vs f32 JAX reference"

    print("KERNEL_OK")
</pallas_src>

<mosaic_0001>
module attributes {stable_mosaic.version = 11 : i64} {
  func.func @_self_attention_kernel(%arg0: i32, %arg1: i32, %arg2: memref<1x256x128xbf16, #tpu.memory_space<vmem>>, %arg3: memref<1x64x128xf32, #tpu.memory_space<vmem>>, %arg4: memref<128x256xbf16, #tpu.memory_space<vmem>>, %arg5: memref<1x256xf32, #tpu.memory_space<vmem>>, %arg6: memref<128x128xbf16, #tpu.memory_space<vmem>>, %arg7: memref<1x128xf32, #tpu.memory_space<vmem>>, %arg8: memref<1x1xf32, #tpu.memory_space<smem>>, %arg9: memref<1x64x128xf32, #tpu.memory_space<vmem>>, %arg10: memref<256x128xbf16, #tpu.memory_space<vmem>>, %arg11: memref<256x128xbf16, #tpu.memory_space<vmem>>) attributes {dimension_semantics = [#tpu.dimension_semantics<parallel>, #tpu.dimension_semantics<arbitrary>], iteration_bounds = array<i64: 2, 4>, scalar_prefetch = 0 : i64, scratch_operands = 2 : i64, tpu.core_type = #tpu.core_type<tc>, window_params = [{transform_indices = @transform_0, window_bounds = array<i64: 1, 256, 128>}, {transform_indices = @transform_1, window_bounds = array<i64: 1, 64, 128>}, {pipeline_mode = #tpu.pipeline_mode<synchronous>, transform_indices = @transform_2, window_bounds = array<i64: 128, 256>}, {pipeline_mode = #tpu.pipeline_mode<synchronous>, transform_indices = @transform_3, window_bounds = array<i64: 1, 256>}, {pipeline_mode = #tpu.pipeline_mode<synchronous>, transform_indices = @transform_4, window_bounds = array<i64: 128, 128>}, {pipeline_mode = #tpu.pipeline_mode<synchronous>, transform_indices = @transform_5, window_bounds = array<i64: 1, 128>}, {transform_indices = @transform_6, window_bounds = array<i64: 1, 1>}, {transform_indices = @transform_7, window_bounds = array<i64: 1, 64, 128>}]} {
    %c0_i32 = arith.constant 0 : i32
    %0 = arith.cmpi eq, %arg1, %c0_i32 : i32
    %1 = arith.extui %0 : i1 to i32
    %c0_i32_0 = arith.constant 0 : i32
    %2 = arith.cmpi ne, %1, %c0_i32_0 : i32
    scf.if %2 {
      %c0_21 = arith.constant 0 : index
      %c0_22 = arith.constant 0 : index
      %38 = vector.load %arg4[%c0_21, %c0_22] : memref<128x256xbf16, #tpu.memory_space<vmem>>, vector<128x256xbf16>
      %c0_23 = arith.constant 0 : index
      %c0_24 = arith.constant 0 : index
      %39 = vector.load %arg5[%c0_23, %c0_24] : memref<1x256xf32, #tpu.memory_space<vmem>>, vector<1x256xf32>
      %c0_i32_25 = arith.constant 0 : i32
      %c2_i32 = arith.constant 2 : i32
      %40 = arith.addi %c0_i32_25, %c2_i32 : i32
      %c1_i32 = arith.constant 1 : i32
      scf.for %arg12 = %c0_i32_25 to %40 step %c1_i32  : i32 {
        %c128_i32 = arith.constant 128 : i32
        %41 = arith.muli %arg12, %c128_i32 : i32
        %42 = tpu.assume_multiple %41, 128 : i32
        %c0_27 = arith.constant 0 : index
        %43 = arith.index_cast %42 : i32 to index
        %c0_28 = arith.constant 0 : index
        %44 = vector.load %arg2[%c0_27, %43, %c0_28] : memref<1x256x128xbf16, #tpu.memory_space<vmem>>, vector<1x128x128xbf16>
        %45 = vector.shape_cast %44 : vector<1x128x128xbf16> to vector<128x128xbf16>
        %cst_29 = arith.constant dense<0.000000e+00> : vector<128x256xf32>
        %46 = tpu.matmul %45, %38, %cst_29 {dimension_numbers = #tpu.dot_dimension_numbers<[1], [0], [0], [1], [0, 0, 1, 1], [], []>} : vector<128x128xbf16>, vector<128x256xbf16>, vector<128x256xf32> -> vector<128x256xf32>
        %47 = vector.broadcast %39 : vector<1x256xf32> to vector<128x256xf32>
        %48 = arith.addf %46, %47 : vector<128x256xf32>
        %cst_30 = arith.constant 0.000000e+00 : f32
        %49 = vector.broadcast %cst_30 : f32 to vector<128x256xf32>
        %50 = arith.maximumf %48, %49 : vector<128x256xf32>
        %51 = arith.truncf %50 : vector<128x256xf32> to vector<128x256xbf16>
        %52 = vector.extract_strided_slice %51 {offsets = [0, 0], sizes = [128, 128], strides = [1, 1]} : vector<128x256xbf16> to vector<128x128xbf16>
        %53 = arith.index_cast %42 : i32 to index
        %c0_31 = arith.constant 0 : index
        %54 = vector.load %arg10[%53, %c0_31] : memref<256x128xbf16, #tpu.memory_space<vmem>>, vector<128x128xbf16>
        tpu.vector_store %arg10[%53, %c0_31], %52 {strides = array<i32>} : memref<256x128xbf16, #tpu.memory_space<vmem>>, vector<128x128xbf16>,
        %55 = vector.extract_strided_slice %51 {offsets = [0, 128], sizes = [128, 128], strides = [1, 1]} : vector<128x256xbf16> to vector<128x128xbf16>
        %56 = arith.index_cast %42 : i32 to index
        %c0_32 = arith.constant 0 : index
        %57 = vector.load %arg11[%56, %c0_32] : memref<256x128xbf16, #tpu.memory_space<vmem>>, vector<128x128xbf16>
        tpu.vector_store %arg11[%56, %c0_32], %55 {strides = array<i32>} : memref<256x128xbf16, #tpu.memory_space<vmem>>, vector<128x128xbf16>,
      }
      %c2_i32_26 = arith.constant 2 : i32
    } else {
    }
    %c0 = arith.constant 0 : index
    %c0_1 = arith.constant 0 : index
    %c0_2 = arith.constant 0 : index
    %3 = vector.load %arg3[%c0, %c0_1, %c0_2] : memref<1x64x128xf32, #tpu.memory_space<vmem>>, vector<1x64x128xf32>
    %4 = vector.shape_cast %3 : vector<1x64x128xf32> to vector<64x128xf32>
    %5 = arith.truncf %4 : vector<64x128xf32> to vector<64x128xbf16>
    %c0_3 = arith.constant 0 : index
    %c0_4 = arith.constant 0 : index
    %6 = vector.load %arg6[%c0_3, %c0_4] : memref<128x128xbf16, #tpu.memory_space<vmem>>, vector<128x128xbf16>
    %cst = arith.constant dense<0.000000e+00> : vector<64x128xf32>
    %7 = tpu.matmul %5, %6, %cst {dimension_numbers = #tpu.dot_dimension_numbers<[1], [0], [0], [1], [0, 0, 1, 1], [], []>} : vector<64x128xbf16>, vector<128x128xbf16>, vector<64x128xf32> -> vector<64x128xf32>
    %c0_5 = arith.constant 0 : index
    %c0_6 = arith.constant 0 : index
    %8 = vector.load %arg7[%c0_5, %c0_6] : memref<1x128xf32, #tpu.memory_space<vmem>>, vector<1x128xf32>
    %9 = vector.broadcast %8 : vector<1x128xf32> to vector<64x128xf32>
    %10 = arith.addf %7, %9 : vector<64x128xf32>
    %cst_7 = arith.constant 0.000000e+00 : f32
    %11 = vector.broadcast %cst_7 : f32 to vector<64x128xf32>
    %12 = arith.maximumf %10, %11 : vector<64x128xf32>
    %13 = arith.truncf %12 : vector<64x128xf32> to vector<64x128xbf16>
    %c0_8 = arith.constant 0 : index
    %c0_9 = arith.constant 0 : index
    %14 = vector.load %arg10[%c0_8, %c0_9] : memref<256x128xbf16, #tpu.memory_space<vmem>>, vector<256x128xbf16>
    %cst_10 = arith.constant dense<0.000000e+00> : vector<64x256xf32>
    %15 = tpu.matmul %13, %14, %cst_10 {dimension_numbers = #tpu.dot_dimension_numbers<[1], [1], [0], [0], [0, 0, 1, 0], [], []>} : vector<64x128xbf16>, vector<256x128xbf16>, vector<64x256xf32> -> vector<64x256xf32>
    %cst_11 = arith.constant dense<0xFF800000> : vector<64xf32>
    %16 = vector.multi_reduction <maximumf>, %15, %cst_11 [1] : vector<64x256xf32> to vector<64xf32>
    %17 = vector.shape_cast %16 : vector<64xf32> to vector<64x1xf32>
    %18 = vector.broadcast %17 : vector<64x1xf32> to vector<64x256xf32>
    %19 = arith.subf %15, %18 : vector<64x256xf32>
    %20 = arith.truncf %19 : vector<64x256xf32> to vector<64x256xbf16>
    %21 = math.exp %20 : vector<64x256xbf16>
    %22 = arith.extf %21 : vector<64x256xbf16> to vector<64x256xf32>
    %cst_12 = arith.constant dense<0.000000e+00> : vector<64xf32>
    %23 = vector.multi_reduction <add>, %22, %cst_12 [1] : vector<64x256xf32> to vector<64xf32>
    %24 = vector.shape_cast %23 : vector<64xf32> to vector<64x1xf32>
    %25 = tpu.reciprocal %24 {approx = true} : vector<64x1xf32> -> vector<64x1xf32>
    %26 = arith.truncf %25 : vector<64x1xf32> to vector<64x1xbf16>
    %27 = vector.broadcast %26 : vector<64x1xbf16> to vector<64x256xbf16>
    %28 = arith.mulf %21, %27 : vector<64x256xbf16>
    %c0_13 = arith.constant 0 : index
    %c0_14 = arith.constant 0 : index
    %29 = vector.load %arg11[%c0_13, %c0_14] : memref<256x128xbf16, #tpu.memory_space<vmem>>, vector<256x128xbf16>
    %cst_15 = arith.constant dense<0.000000e+00> : vector<64x128xf32>
    %30 = tpu.matmul %28, %29, %cst_15 {dimension_numbers = #tpu.dot_dimension_numbers<[1], [0], [0], [1], [0, 0, 1, 1], [], []>} : vector<64x256xbf16>, vector<256x128xbf16>, vector<64x128xf32> -> vector<64x128xf32>
    %c0_16 = arith.constant 0 : index
    %c0_17 = arith.constant 0 : index
    %31 = memref.load %arg8[%c0_16, %c0_17] : memref<1x1xf32, #tpu.memory_space<smem>>
    %32 = vector.broadcast %31 : f32 to vector<64x128xf32>
    %33 = arith.mulf %32, %30 : vector<64x128xf32>
    %34 = arith.addf %33, %4 : vector<64x128xf32>
    %c0_18 = arith.constant 0 : index
    %c0_19 = arith.constant 0 : index
    %c0_20 = arith.constant 0 : index
    %35 = vector.load %arg9[%c0_18, %c0_19, %c0_20] : memref<1x64x128xf32, #tpu.memory_space<vmem>>, vector<1x64x128xf32>
    %36 = vector.shape_cast %35 : vector<1x64x128xf32> to vector<64x128xf32>
    %37 = vector.shape_cast %34 : vector<64x128xf32> to vector<1x64x128xf32>
    tpu.vector_store %arg9[%c0_18, %c0_19, %c0_20], %37 {strides = array<i32>} : memref<1x64x128xf32, #tpu.memory_space<vmem>>, vector<1x64x128xf32>,
    return
  }
  func.func @transform_0(%arg0: i32, %arg1: i32) -> (i32, i32, i32) {
    %c0_i32 = arith.constant 0 : i32
    %c0_i32_0 = arith.constant 0 : i32
    %c0_i32_1 = arith.constant 0 : i32
    return %arg0, %c0_i32, %c0_i32_0 : i32, i32, i32
  }
  func.func @transform_1(%arg0: i32, %arg1: i32) -> (i32, i32, i32) {
    %c0_i32 = arith.constant 0 : i32
    %c0_i32_0 = arith.constant 0 : i32
    return %arg0, %arg1, %c0_i32 : i32, i32, i32
  }
  func.func @transform_2(%arg0: i32, %arg1: i32) -> (i32, i32) {
    %c0_i32 = arith.constant 0 : i32
    %c0_i32_0 = arith.constant 0 : i32
    %c0_i32_1 = arith.constant 0 : i32
    return %c0_i32, %c0_i32_0 : i32, i32
  }
  func.func @transform_3(%arg0: i32, %arg1: i32) -> (i32, i32) {
    %c0_i32 = arith.constant 0 : i32
    %c0_i32_0 = arith.constant 0 : i32
    %c0_i32_1 = arith.constant 0 : i32
    return %c0_i32, %c0_i32_0 : i32, i32
  }
  func.func @transform_4(%arg0: i32, %arg1: i32) -> (i32, i32) {
    %c0_i32 = arith.constant 0 : i32
    %c0_i32_0 = arith.constant 0 : i32
    %c0_i32_1 = arith.constant 0 : i32
    return %c0_i32, %c0_i32_0 : i32, i32
  }
  func.func @transform_5(%arg0: i32, %arg1: i32) -> (i32, i32) {
    %c0_i32 = arith.constant 0 : i32
    %c0_i32_0 = arith.constant 0 : i32
    %c0_i32_1 = arith.constant 0 : i32
    return %c0_i32, %c0_i32_0 : i32, i32
  }
  func.func @transform_6(%arg0: i32, %arg1: i32) -> (i32, i32) {
    %c0_i32 = arith.constant 0 : i32
    %c0_i32_0 = arith.constant 0 : i32
    %c0_i32_1 = arith.constant 0 : i32
    return %c0_i32, %c0_i32_0 : i32, i32
  }
  func.func @transform_7(%arg0: i32, %arg1: i32) -> (i32, i32, i32) {
    %c0_i32 = arith.constant 0 : i32
    %c0_i32_0 = arith.constant 0 : i32
    return %arg0, %arg1, %c0_i32 : i32, i32, i32
  }
}

module attributes {stable_mosaic.version = 11 : i64} {
  func.func @_self_attention_kernel(%arg0: i32, %arg1: i32, %arg2: memref<1x256x128xbf16, #tpu.memory_space<vmem>>, %arg3: memref<1x64x128xf32, #tpu.memory_space<vmem>>, %arg4: memref<128x256xbf16, #tpu.memory_space<vmem>>, %arg5: memref<1x256xf32, #tpu.memory_space<vmem>>, %arg6: memref<128x128xbf16, #tpu.memory_space<vmem>>, %arg7: memref<1x128xf32, #tpu.memory_space<vmem>>, %arg8: memref<1x1xf32, #tpu.memory_space<smem>>, %arg9: memref<1x64x128xf32, #tpu.memory_space<vmem>>, %arg10: memref<256x128xbf16, #tpu.memory_space<vmem>>, %arg11: memref<256x128xbf16, #tpu.memory_space<vmem>>) attributes {dimension_semantics = [#tpu.dimension_semantics<parallel>, #tpu.dimension_semantics<arbitrary>], iteration_bounds = array<i64: 2, 4>, scalar_prefetch = 0 : i64, scratch_operands = 2 : i64, tpu.core_type = #tpu.core_type<tc>, window_params = [{transform_indices = @transform_0, window_bounds = array<i64: 1, 256, 128>}, {transform_indices = @transform_1, window_bounds = array<i64: 1, 64, 128>}, {pipeline_mode = #tpu.pipeline_mode<synchronous>, transform_indices = @transform_2, window_bounds = array<i64: 128, 256>}, {pipeline_mode = #tpu.pipeline_mode<synchronous>, transform_indices = @transform_3, window_bounds = array<i64: 1, 256>}, {pipeline_mode = #tpu.pipeline_mode<synchronous>, transform_indices = @transform_4, window_bounds = array<i64: 128, 128>}, {pipeline_mode = #tpu.pipeline_mode<synchronous>, transform_indices = @transform_5, window_bounds = array<i64: 1, 128>}, {transform_indices = @transform_6, window_bounds = array<i64: 1, 1>}, {transform_indices = @transform_7, window_bounds = array<i64: 1, 64, 128>}]} {
    %c0_i32 = arith.constant 0 : i32
    %0 = arith.cmpi eq, %arg1, %c0_i32 : i32
    %1 = arith.extui %0 : i1 to i32
    %c0_i32_0 = arith.constant 0 : i32
    %2 = arith.cmpi ne, %1, %c0_i32_0 : i32
    scf.if %2 {
      %c0_21 = arith.constant 0 : index
      %c0_22 = arith.constant 0 : index
      %38 = vector.load %arg4[%c0_21, %c0_22] : memref<128x256xbf16, #tpu.memory_space<vmem>>, vector<128x256xbf16>
      %c0_23 = arith.constant 0 : index
      %c0_24 = arith.constant 0 : index
      %39 = vector.load %arg5[%c0_23, %c0_24] : memref<1x256xf32, #tpu.memory_space<vmem>>, vector<1x256xf32>
      %c0_i32_25 = arith.constant 0 : i32
      %c2_i32 = arith.constant 2 : i32
      %40 = arith.addi %c0_i32_25, %c2_i32 : i32
      %c1_i32 = arith.constant 1 : i32
      scf.for %arg12 = %c0_i32_25 to %40 step %c1_i32  : i32 {
        %c128_i32 = arith.constant 128 : i32
        %41 = arith.muli %arg12, %c128_i32 : i32
        %42 = tpu.assume_multiple %41, 128 : i32
        %c0_27 = arith.constant 0 : index
        %43 = arith.index_cast %42 : i32 to index
        %c0_28 = arith.constant 0 : index
        %44 = vector.load %arg2[%c0_27, %43, %c0_28] : memref<1x256x128xbf16, #tpu.memory_space<vmem>>, vector<1x128x128xbf16>
        %45 = vector.shape_cast %44 : vector<1x128x128xbf16> to vector<128x128xbf16>
        %cst_29 = arith.constant dense<0.000000e+00> : vector<128x256xf32>
        %46 = tpu.matmul %45, %38, %cst_29 {dimension_numbers = #tpu.dot_dimension_numbers<[1], [0], [0], [1], [0, 0, 1, 1], [], []>} : vector<128x128xbf16>, vector<128x256xbf16>, vector<128x256xf32> -> vector<128x256xf32>
        %47 = vector.broadcast %39 : vector<1x256xf32> to vector<128x256xf32>
        %48 = arith.addf %46, %47 : vector<128x256xf32>
        %cst_30 = arith.constant 0.000000e+00 : f32
        %49 = vector.broadcast %cst_30 : f32 to vector<128x256xf32>
        %50 = arith.maximumf %48, %49 : vector<128x256xf32>
        %51 = arith.truncf %50 : vector<128x256xf32> to vector<128x256xbf16>
        %52 = vector.extract_strided_slice %51 {offsets = [0, 0], sizes = [128, 128], strides = [1, 1]} : vector<128x256xbf16> to vector<128x128xbf16>
        %53 = arith.index_cast %42 : i32 to index
        %c0_31 = arith.constant 0 : index
        %54 = vector.load %arg10[%53, %c0_31] : memref<256x128xbf16, #tpu.memory_space<vmem>>, vector<128x128xbf16>
        tpu.vector_store %arg10[%53, %c0_31], %52 {strides = array<i32>} : memref<256x128xbf16, #tpu.memory_space<vmem>>, vector<128x128xbf16>,
        %55 = vector.extract_strided_slice %51 {offsets = [0, 128], sizes = [128, 128], strides = [1, 1]} : vector<128x256xbf16> to vector<128x128xbf16>
        %56 = arith.index_cast %42 : i32 to index
        %c0_32 = arith.constant 0 : index
        %57 = vector.load %arg11[%56, %c0_32] : memref<256x128xbf16, #tpu.memory_space<vmem>>, vector<128x128xbf16>
        tpu.vector_store %arg11[%56, %c0_32], %55 {strides = array<i32>} : memref<256x128xbf16, #tpu.memory_space<vmem>>, vector<128x128xbf16>,
      }
      %c2_i32_26 = arith.constant 2 : i32
    } else {
    }
    %c0 = arith.constant 0 : index
    %c0_1 = arith.constant 0 : index
    %c0_2 = arith.constant 0 : index
    %3 = vector.load %arg3[%c0, %c0_1, %c0_2] : memref<1x64x128xf32, #tpu.memory_space<vmem>>, vector<1x64x128xf32>
    %4 = vector.shape_cast %3 : vector<1x64x128xf32> to vector<64x128xf32>
    %5 = arith.truncf %4 : vector<64x128xf32> to vector<64x128xbf16>
    %c0_3 = arith.constant 0 : index
    %c0_4 = arith.constant 0 : index
    %6 = vector.load %arg6[%c0_3, %c0_4] : memref<128x128xbf16, #tpu.memory_space<vmem>>, vector<128x128xbf16>
    %cst = arith.constant dense<0.000000e+00> : vector<64x128xf32>
    %7 = tpu.matmul %5, %6, %cst {dimension_numbers = #tpu.dot_dimension_numbers<[1], [0], [0], [1], [0, 0, 1, 1], [], []>} : vector<64x128xbf16>, vector<128x128xbf16>, vector<64x128xf32> -> vector<64x128xf32>
    %c0_5 = arith.constant 0 : index
    %c0_6 = arith.constant 0 : index
    %8 = vector.load %arg7[%c0_5, %c0_6] : memref<1x128xf32, #tpu.memory_space<vmem>>, vector<1x128xf32>
    %9 = vector.broadcast %8 : vector<1x128xf32> to vector<64x128xf32>
    %10 = arith.addf %7, %9 : vector<64x128xf32>
    %cst_7 = arith.constant 0.000000e+00 : f32
    %11 = vector.broadcast %cst_7 : f32 to vector<64x128xf32>
    %12 = arith.maximumf %10, %11 : vector<64x128xf32>
    %13 = arith.truncf %12 : vector<64x128xf32> to vector<64x128xbf16>
    %c0_8 = arith.constant 0 : index
    %c0_9 = arith.constant 0 : index
    %14 = vector.load %arg10[%c0_8, %c0_9] : memref<256x128xbf16, #tpu.memory_space<vmem>>, vector<256x128xbf16>
    %cst_10 = arith.constant dense<0.000000e+00> : vector<64x256xf32>
    %15 = tpu.matmul %13, %14, %cst_10 {dimension_numbers = #tpu.dot_dimension_numbers<[1], [1], [0], [0], [0, 0, 1, 0], [], []>} : vector<64x128xbf16>, vector<256x128xbf16>, vector<64x256xf32> -> vector<64x256xf32>
    %cst_11 = arith.constant dense<0xFF800000> : vector<64xf32>
    %16 = vector.multi_reduction <maximumf>, %15, %cst_11 [1] : vector<64x256xf32> to vector<64xf32>
    %17 = vector.shape_cast %16 : vector<64xf32> to vector<64x1xf32>
    %18 = vector.broadcast %17 : vector<64x1xf32> to vector<64x256xf32>
    %19 = arith.subf %15, %18 : vector<64x256xf32>
    %20 = arith.truncf %19 : vector<64x256xf32> to vector<64x256xbf16>
    %21 = math.exp %20 : vector<64x256xbf16>
    %22 = arith.extf %21 : vector<64x256xbf16> to vector<64x256xf32>
    %cst_12 = arith.constant dense<0.000000e+00> : vector<64xf32>
    %23 = vector.multi_reduction <add>, %22, %cst_12 [1] : vector<64x256xf32> to vector<64xf32>
    %24 = vector.shape_cast %23 : vector<64xf32> to vector<64x1xf32>
    %25 = tpu.reciprocal %24 {approx = true} : vector<64x1xf32> -> vector<64x1xf32>
    %26 = arith.truncf %25 : vector<64x1xf32> to vector<64x1xbf16>
    %27 = vector.broadcast %26 : vector<64x1xbf16> to vector<64x256xbf16>
    %28 = arith.mulf %21, %27 : vector<64x256xbf16>
    %c0_13 = arith.constant 0 : index
    %c0_14 = arith.constant 0 : index
    %29 = vector.load %arg11[%c0_13, %c0_14] : memref<256x128xbf16, #tpu.memory_space<vmem>>, vector<256x128xbf16>
    %cst_15 = arith.constant dense<0.000000e+00> : vector<64x128xf32>
    %30 = tpu.matmul %28, %29, %cst_15 {dimension_numbers = #tpu.dot_dimension_numbers<[1], [0], [0], [1], [0, 0, 1, 1], [], []>} : vector<64x256xbf16>, vector<256x128xbf16>, vector<64x128xf32> -> vector<64x128xf32>
    %c0_16 = arith.constant 0 : index
    %c0_17 = arith.constant 0 : index
    %31 = memref.load %arg8[%c0_16, %c0_17] : memref<1x1xf32, #tpu.memory_space<smem>>
    %32 = vector.broadcast %31 : f32 to vector<64x128xf32>
    %33 = arith.mulf %32, %30 : vector<64x128xf32>
    %34 = arith.addf %33, %4 : vector<64x128xf32>
    %c0_18 = arith.constant 0 : index
    %c0_19 = arith.constant 0 : index
    %c0_20 = arith.constant 0 : index
    %35 = vector.load %arg9[%c0_18, %c0_19, %c0_20] : memref<1x64x128xf32, #tpu.memory_space<vmem>>, vector<1x64x128xf32>
    %36 = vector.shape_cast %35 : vector<1x64x128xf32> to vector<64x128xf32>
    %37 = vector.shape_cast %34 : vector<64x128xf32> to vector<1x64x128xf32>
    tpu.vector_store %arg9[%c0_18, %c0_19, %c0_20], %37 {strides = array<i32>} : memref<1x64x128xf32, #tpu.memory_space<vmem>>, vector<1x64x128xf32>,
    return
  }
  func.func @transform_0(%arg0: i32, %arg1: i32) -> (i32, i32, i32) {
    %c0_i32 = arith.constant 0 : i32
    %c0_i32_0 = arith.constant 0 : i32
    %c0_i32_1 = arith.constant 0 : i32
    return %arg0, %c0_i32, %c0_i32_0 : i32, i32, i32
  }
  func.func @transform_1(%arg0: i32, %arg1: i32) -> (i32, i32, i32) {
    %c0_i32 = arith.constant 0 : i32
    %c0_i32_0 = arith.constant 0 : i32
    return %arg0, %arg1, %c0_i32 : i32, i32, i32
  }
  func.func @transform_2(%arg0: i32, %arg1: i32) -> (i32, i32) {
    %c0_i32 = arith.constant 0 : i32
    %c0_i32_0 = arith.constant 0 : i32
    %c0_i32_1 = arith.constant 0 : i32
    return %c0_i32, %c0_i32_0 : i32, i32
  }
  func.func @transform_3(%arg0: i32, %arg1: i32) -> (i32, i32) {
    %c0_i32 = arith.constant 0 : i32
    %c0_i32_0 = arith.constant 0 : i32
    %c0_i32_1 = arith.constant 0 : i32
    return %c0_i32, %c0_i32_0 : i32, i32
  }
  func.func @transform_4(%arg0: i32, %arg1: i32) -> (i32, i32) {
    %c0_i32 = arith.constant 0 : i32
    %c0_i32_0 = arith.constant 0 : i32
    %c0_i32_1 = arith.constant 0 : i32
    return %c0_i32, %c0_i32_0 : i32, i32
  }
  func.func @transform_5(%arg0: i32, %arg1: i32) -> (i32, i32) {
    %c0_i32 = arith.constant 0 : i32
    %c0_i32_0 = arith.constant 0 : i32
    %c0_i32_1 = arith.constant 0 : i32
    return %c0_i32, %c0_i32_0 : i32, i32
  }
  func.func @transform_6(%arg0: i32, %arg1: i32) -> (i32, i32) {
    %c0_i32 = arith.constant 0 : i32
    %c0_i32_0 = arith.constant 0 : i32
    %c0_i32_1 = arith.constant 0 : i32
    return %c0_i32, %c0_i32_0 : i32, i32
  }
  func.func @transform_7(%arg0: i32, %arg1: i32) -> (i32, i32, i32) {
    %c0_i32 = arith.constant 0 : i32
    %c0_i32_0 = arith.constant 0 : i32
    return %arg0, %arg1, %c0_i32 : i32, i32, i32
  }
}

</mosaic_0001>

<llo_original>
// kernel: tpu_custom_call.1
$region0: #{tpu_custom_call.1}
  #allocation0 [shape = 'u32[]', space=smem, size = 0x4, offset = 0x4, fixed_abs, tag = 'smem constant byte address 0x4 - core index']
  #allocation1 [shape = 'u32[144,128]{1,0:T(1,128)}', space=vmem, size = 0x12000, scoped, tag = 'internal scratch']
  #allocation2 [shape = 'bf16[256,128]{1,0:T(16,128)(2,1)}', space=vmem, size = 0x10000, scoped, tag = 'scratch operand']
  #allocation3 [shape = 'bf16[256,128]{1,0:T(16,128)(2,1)}', space=vmem, size = 0x10000, scoped, tag = 'scratch operand']
  #allocation4 [shape = 'f32[1,1]{1,0:T(1,128)S(6)}', space=smem, size = 0x200, scoped, tag = 'scoped memory for tpu_custom_call.1']
  %s0 = inlined_call_operand.hbm [shape: bf16[2,256,128], index: 0, kind: input, shape index: {}]
  %s1 = inlined_call_operand.hbm [shape: f32[2,256,128], index: 1, kind: input, shape index: {}]
  %s2 = inlined_call_operand.hbm [shape: bf16[128,256], index: 2, kind: input, shape index: {}]
  %s3 = inlined_call_operand.hbm [shape: f32[1,256], index: 3, kind: input, shape index: {}]
  %s4 = inlined_call_operand.hbm [shape: bf16[128,128], index: 4, kind: input, shape index: {}]
  %s5 = inlined_call_operand.hbm [shape: f32[1,128], index: 5, kind: input, shape index: {}]
  %s6 = inlined_call_operand.<no memory space> [shape: f32[1,1], index: 6, kind: input, shape index: {}]
  %s7 = inlined_call_operand.hbm [shape: f32[2,256,128], index: 7, kind: output, shape index: {}]
  %s8 = sld [smem:[#allocation0]]
  $region96: #{tpu_custom_call.1} parent=0
    _
  %s10 = ssub.s32 1, %s8
  %s11 = scalar_select 0, %s10, %s8
  %12 = sst [smem:[#allocation4]] %s6
  $region1: #{tpu_custom_call.1} parent=0
    #allocation5 [shape = 'u8[131072]{0}', space=vmem, size = 0x20000, scoped, tag = 'input window, operand 0']
    #allocation6 [shape = 's32[2]{0}', space=sflag, size = 0x8, scoped, tag = 'scoped memory for tpu_custom_call.1']
    #allocation7 [shape = 's32[2]{0}', space=sflag, size = 0x8, scoped, tag = 'scoped memory for tpu_custom_call.1']
    #allocation8 [shape = 'u8[65536]{0}', space=vmem, size = 0x10000, scoped, tag = 'input window, operand 1']
    #allocation9 [shape = 's32[2]{0}', space=sflag, size = 0x8, scoped, tag = 'scoped memory for tpu_custom_call.1']
    #allocation10 [shape = 'u8[65536]{0}', space=vmem, size = 0x10000, scoped, tag = 'input window, operand 2, single buffered']
    #allocation11 [shape = 'u8[1024]{0}', space=vmem, size = 0x400, scoped, tag = 'input window, operand 3, single buffered']
    #allocation12 [shape = 's32[1]{0}', space=sflag, size = 0x4, scoped, tag = 'scoped memory for tpu_custom_call.1']
    #allocation13 [shape = 'u8[32768]{0}', space=vmem, size = 0x8000, scoped, tag = 'input window, operand 4, single buffered']
    #allocation14 [shape = 'u8[512]{0}', space=vmem, size = 0x400, scoped, tag = 'input window, operand 5, single buffered']
    #allocation15 [shape = 's32[1]{0}', space=sflag, size = 0x4, scoped, tag = 'scoped memory for tpu_custom_call.1']
    #allocation16 [shape = 'u8[65536]{0}', space=vmem, size = 0x10000, scoped, tag = 'output window, operand 0']
    %13 = vsyncpa [#allocation6], 0
    %s14 = scalar_lea.sflag [#allocation6], 1
    %15 = vsyncpa %s14, 0
    %16 = vsyncpa [#allocation9], 0
    %s17 = scalar_lea.sflag [#allocation9], 1
    %18 = vsyncpa %s17, 0
    %19 = vsyncpa [#allocation12], 0
    %20 = vsyncpa [#allocation15], 0
    %21 = vsyncpa [#allocation7], 0
    %s22 = scalar_lea.sflag [#allocation7], 1
    %23 = vsyncpa %s22, 0
    loop: start=0, step=1, limit=10
    $region2: #{tpu_custom_call.1} parent=1 // loop_pre_header
      _
    $region3: #{tpu_custom_call.1} parent=1 // loop_header
      %s25 = sphi 0, %s29
      %p26 = scmp.ge.s32.totalorder %s25, 10
      %s32 = sphi 0, %s44
      %s33 = sphi 0, %s40
      %s34 = sphi 0, %s32
      %s35 = sphi 0, %s33
      %s36 = sphi 0, %s34
      %s37 = sphi 0, %s35
      %s47 = sphi 0, %s49
      %s50 = sphi 0, %s47
      %s51 = sphi 0, %s50
      %s67 = sphi 0, %s51
      %s75 = sphi 0, %s77
      %s78 = sphi 0, %s75
      %s79 = sphi 0, %s78
      %s95 = sphi 0, %s79
      %s99 = sphi 0, %s99
      %s101 = sphi 0, %s99
      %s102 = sphi 0, %s101
      %s116 = sphi 0, %s102
      %s120 = sphi 0, %s120
      %s122 = sphi 0, %s120
      %s123 = sphi 0, %s122
      %s137 = sphi 0, %s123
      %s141 = sphi 0, %s141
      %s143 = sphi 0, %s141
      %s144 = sphi 0, %s143
      %s158 = sphi 0, %s144
      %s162 = sphi 0, %s162
      %s164 = sphi 0, %s162
      %s165 = sphi 0, %s164
      %s179 = sphi 0, %s165
      %s183 = sphi 0, %s183
      %s185 = sphi 0, %s183
      %s186 = sphi 0, %s185
      %s200 = sphi 0, %s186
      %s208 = sphi 0, %s210
      %s211 = sphi 0, %s208
      %s212 = sphi 0, %s211
      %s228 = sphi 0, %s212
    $region4: #{tpu_custom_call.1} parent=1 // loop_header_branch
      %28 = sbr.rel (%p26) target = $region8
    $region5: #{tpu_custom_call.1} parent=1 // loop_body
      %s30 = ssub.s32 %s25, 1
      %s31 = ssub.s32 %s25, 2
      %s38 = sadd.s32 1, %s33
      %p39 = scmp.ge.s32.totalorder %s38, 4
      %s40 = scalar_select %p39, 0, %s38
      %s41 = sadd.s32 1, %s32
      %s42 = scalar_select %p39, %s41, %s32
      %p43 = scmp.ge.s32.totalorder %s42, 2
      %s44 = scalar_select %p43, 0, %s42
      %s45 = ssub.s32 %s32, %s44
      %p46 = scmp.eq.s32.totalorder %s45, 0
      %s48 = sadd.s32 %s47, 1
      %s49 = scalar_select %p46, %s47, %s48
      %p52 = pneg %p46
      %p53 = scmp.eq.s32.totalorder %s25, 7
      %p54 = por %p52, %p53
      %p55 = scmp.ne.s32.totalorder %s47, %s50
      %p56 = scmp.eq.s32.totalorder %s25, 0
      %p57 = por %p55, %p56
      %p58 = scmp.ne.s32.totalorder %s47, %s50
      %p59 = scmp.eq.s32.totalorder %s30, 7
      %p60 = por %p58, %p59
      %p61 = scmp.ne.s32.totalorder %s50, %s51
      %p62 = scmp.eq.s32.totalorder %s30, 0
      %p63 = por %p61, %p62
      %p64 = scmp.ne.s32.totalorder %s50, %s51
      %p65 = scmp.eq.s32.totalorder %s31, 7
      %p66 = por %p64, %p65
      %p68 = scmp.ne.s32.totalorder %s51, %s67
      %p69 = scmp.eq.s32.totalorder %s31, 0
      %p70 = por %p68, %p69
      %s71 = ssub.s32 %s32, %s44
      %s72 = ssub.s32 %s33, %s40
      %s73 = sor.u32 %s71, %s72
      %p74 = scmp.eq.s32.totalorder %s73, 0
      %s76 = sadd.s32 %s75, 1
      %s77 = scalar_select %p74, %s75, %s76
      %p80 = pneg %p74
      %p81 = scmp.eq.s32.totalorder %s25, 7
      %p82 = por %p80, %p81
      %p83 = scmp.ne.s32.totalorder %s75, %s78
      %p84 = scmp.eq.s32.totalorder %s25, 0
      %p85 = por %p83, %p84
      %p86 = scmp.ne.s32.totalorder %s75, %s78
      %p87 = scmp.eq.s32.totalorder %s30, 7
      %p88 = por %p86, %p87
      %p89 = scmp.ne.s32.totalorder %s78, %s79
      %p90 = scmp.eq.s32.totalorder %s30, 0
      %p91 = por %p89, %p90
      %p92 = scmp.ne.s32.totalorder %s78, %s79
      %p93 = scmp.eq.s32.totalorder %s31, 7
      %p94 = por %p92, %p93
      %p96 = scmp.ne.s32.totalorder %s79, %s95
      %p97 = scmp.eq.s32.totalorder %s31, 0
      %p98 = por %p96, %p97
      %s100 = sadd.s32 %s99, 1
      %p103 = scmp.eq.s32.totalorder %s25, 7
      %p104 = scmp.ne.s32.totalorder %s99, %s101
      %p105 = scmp.eq.s32.totalorder %s25, 0
      %p106 = por %p104, %p105
      %p107 = scmp.ne.s32.totalorder %s99, %s101
      %p108 = scmp.eq.s32.totalorder %s30, 7
      %p109 = por %p107, %p108
      %p110 = scmp.ne.s32.totalorder %s101, %s102
      %p111 = scmp.eq.s32.totalorder %s30, 0
      %p112 = por %p110, %p111
      %p113 = scmp.ne.s32.totalorder %s101, %s102
      %p114 = scmp.eq.s32.totalorder %s31, 7
      %p115 = por %p113, %p114
      %p117 = scmp.ne.s32.totalorder %s102, %s116
      %p118 = scmp.eq.s32.totalorder %s31, 0
      %p119 = por %p117, %p118
      %s121 = sadd.s32 %s120, 1
      %p124 = scmp.eq.s32.totalorder %s25, 7
      %p125 = scmp.ne.s32.totalorder %s120, %s122
      %p126 = scmp.eq.s32.totalorder %s25, 0
      %p127 = por %p125, %p126
      %p128 = scmp.ne.s32.totalorder %s120, %s122
      %p129 = scmp.eq.s32.totalorder %s30, 7
      %p130 = por %p128, %p129
      %p131 = scmp.ne.s32.totalorder %s122, %s123
      %p132 = scmp.eq.s32.totalorder %s30, 0
      %p133 = por %p131, %p132
      %p134 = scmp.ne.s32.totalorder %s122, %s123
      %p135 = scmp.eq.s32.totalorder %s31, 7
      %p136 = por %p134, %p135
      %p138 = scmp.ne.s32.totalorder %s123, %s137
      %p139 = scmp.eq.s32.totalorder %s31, 0
      %p140 = por %p138, %p139
      %s142 = sadd.s32 %s141, 1
      %p145 = scmp.eq.s32.totalorder %s25, 7
      %p146 = scmp.ne.s32.totalorder %s141, %s143
      %p147 = scmp.eq.s32.totalorder %s25, 0
      %p148 = por %p146, %p147
      %p149 = scmp.ne.s32.totalorder %s141, %s143
      %p150 = scmp.eq.s32.totalorder %s30, 7
      %p151 = por %p149, %p150
      %p152 = scmp.ne.s32.totalorder %s143, %s144
      %p153 = scmp.eq.s32.totalorder %s30, 0
      %p154 = por %p152, %p153
      %p155 = scmp.ne.s32.totalorder %s143, %s144
      %p156 = scmp.eq.s32.totalorder %s31, 7
      %p157 = por %p155, %p156
      %p159 = scmp.ne.s32.totalorder %s144, %s158
      %p160 = scmp.eq.s32.totalorder %s31, 0
      %p161 = por %p159, %p160
      %s163 = sadd.s32 %s162, 1
      %p166 = scmp.eq.s32.totalorder %s25, 7
      %p167 = scmp.ne.s32.totalorder %s162, %s164
      %p168 = scmp.eq.s32.totalorder %s25, 0
      %p169 = por %p167, %p168
      %p170 = scmp.ne.s32.totalorder %s162, %s164
      %p171 = scmp.eq.s32.totalorder %s30, 7
      %p172 = por %p170, %p171
      %p173 = scmp.ne.s32.totalorder %s164, %s165
      %p174 = scmp.eq.s32.totalorder %s30, 0
      %p175 = por %p173, %p174
      %p176 = scmp.ne.s32.totalorder %s164, %s165
      %p177 = scmp.eq.s32.totalorder %s31, 7
      %p178 = por %p176, %p177
      %p180 = scmp.ne.s32.totalorder %s165, %s179
      %p181 = scmp.eq.s32.totalorder %s31, 0
      %p182 = por %p180, %p181
      %s184 = sadd.s32 %s183, 1
      %p187 = scmp.eq.s32.totalorder %s25, 7
      %p188 = scmp.ne.s32.totalorder %s183, %s185
      %p189 = scmp.eq.s32.totalorder %s25, 0
      %p190 = por %p188, %p189
      %p191 = scmp.ne.s32.totalorder %s183, %s185
      %p192 = scmp.eq.s32.totalorder %s30, 7
      %p193 = por %p191, %p192
      %p194 = scmp.ne.s32.totalorder %s185, %s186
      %p195 = scmp.eq.s32.totalorder %s30, 0
      %p196 = por %p194, %p195
      %p197 = scmp.ne.s32.totalorder %s185, %s186
      %p198 = scmp.eq.s32.totalorder %s31, 7
      %p199 = por %p197, %p198
      %p201 = scmp.ne.s32.totalorder %s186, %s200
      %p202 = scmp.eq.s32.totalorder %s31, 0
      %p203 = por %p201, %p202
      %s204 = ssub.s32 %s32, %s44
      %s205 = ssub.s32 %s33, %s40
      %s206 = sor.u32 %s204, %s205
      %p207 = scmp.eq.s32.totalorder %s206, 0
      %s209 = sadd.s32 %s208, 1
      %s210 = scalar_select %p207, %s208, %s209
      %p213 = pneg %p207
      %p214 = scmp.eq.s32.totalorder %s25, 7
      %p215 = por %p213, %p214
      %p216 = scmp.ne.s32.totalorder %s208, %s211
      %p217 = scmp.eq.s32.totalorder %s25, 0
      %p218 = por %p216, %p217
      %p219 = scmp.ne.s32.totalorder %s208, %s211
      %p220 = scmp.eq.s32.totalorder %s30, 7
      %p221 = por %p219, %p220
      %p222 = scmp.ne.s32.totalorder %s211, %s212
      %p223 = scmp.eq.s32.totalorder %s30, 0
      %p224 = por %p222, %p223
      %p225 = scmp.ne.s32.totalorder %s211, %s212
      %p226 = scmp.eq.s32.totalorder %s31, 7
      %p227 = por %p225, %p226
      %p229 = scmp.ne.s32.totalorder %s212, %s228
      %p230 = scmp.eq.s32.totalorder %s31, 0
      %p231 = por %p229, %p230
      %p232 = scmp.le.s32.totalorder 1, %s25
      %p233 = scmp.lt.s32.totalorder %s25, 9
      %p234 = pnand %p232, %p233
      %p235 = pneg %p234
      // Predicated region
      $region9: #{tpu_custom_call.1} parent=5 // pred_check
        _
      $region10: #{tpu_custom_call.1} parent=5 // pred_check_branch
        %237 = sbr.rel (%p234) target = $region12
      $region11: #{tpu_custom_call.1} parent=5 // pred_region
        %s238 = ssub.s32 %s25, 1
        // Predicated region
        $region13: #{tpu_custom_call.1} parent=11 // pred_check
          %p239 = pneg %p112
        $region14: #{tpu_custom_call.1} parent=11 // pred_check_branch
          %241 = sbr.rel (%p239) target = $region16
        $region15: #{tpu_custom_call.1} parent=11 // pred_region
          %s243 = ssub.s32 2048, 2048
          %244 = vsyncadd [#allocation9], %s243
          %s245 = sshll.u32 [#allocation10], 4
          %s246 = int_to_ptr.vmem [resolvable:$true] %s245
          %251 = dma.hbm_to_vmem [thread:$0]  %s2, 2048, %s246, [#allocation9], 128, 128, 8
        $region16: #{tpu_custom_call.1} parent=11 // pred_fallthru
          _
        // Predicated region
        $region17: #{tpu_custom_call.1} parent=11 // pred_check
          %p252 = pneg %p133
        $region18: #{tpu_custom_call.1} parent=11 // pred_check_branch
          %254 = sbr.rel (%p252) target = $region20
        $region19: #{tpu_custom_call.1} parent=11 // pred_region
          %s256 = ssub.s32 32, 32
          %257 = vsyncadd [#allocation12], %s256
          %s259 = sshll.u32 [#allocation11], 4
          %s260 = int_to_ptr.vmem [resolvable:$true] %s259
          %262 = dma.hbm_to_vmem [thread:$0]  %s3, 32, %s260, [#allocation12]
        $region20: #{tpu_custom_call.1} parent=11 // pred_fallthru
          _
        // Predicated region
        $region21: #{tpu_custom_call.1} parent=11 // pred_check
          %p263 = pneg %p154
        $region22: #{tpu_custom_call.1} parent=11 // pred_check_branch
          %265 = sbr.rel (%p263) target = $region24
        $region23: #{tpu_custom_call.1} parent=11 // pred_region
          %s267 = ssub.s32 1024, 1024
          %268 = vsyncadd [#allocation12], %s267
          %s269 = sshll.u32 [#allocation13], 4
          %s270 = int_to_ptr.vmem [resolvable:$true] %s269
          %275 = dma.hbm_to_vmem [thread:$0]  %s4, 1024, %s270, [#allocation12], 64, 64, 4
        $region24: #{tpu_custom_call.1} parent=11 // pred_fallthru
          _
        // Predicated region
        $region25: #{tpu_custom_call.1} parent=11 // pred_check
          %p276 = pneg %p175
        $region26: #{tpu_custom_call.1} parent=11 // pred_check_branch
          %278 = sbr.rel (%p276) target = $region28
        $region27: #{tpu_custom_call.1} parent=11 // pred_region
          %s280 = ssub.s32 16, 16
          %281 = vsyncadd [#allocation15], %s280
          %s283 = sshll.u32 [#allocation14], 4
          %s284 = int_to_ptr.vmem [resolvable:$true] %s283
          %286 = dma.hbm_to_vmem [thread:$0]  %s5, 16, %s284, [#allocation15]
        $region28: #{tpu_custom_call.1} parent=11 // pred_fallthru
          _
        // Predicated region
        $region29: #{tpu_custom_call.1} parent=11 // pred_check
          %p287 = pneg %p196
        $region30: #{tpu_custom_call.1} parent=11 // pred_check_branch
          %289 = sbr.rel (%p287) target = $region32
        $region31: #{tpu_custom_call.1} parent=11 // pred_region
          _
        $region32: #{tpu_custom_call.1} parent=11 // pred_fallthru
          _
      $region12: #{tpu_custom_call.1} parent=5 // pred_fallthru
        _
      %p290 = scmp.lt.s32.totalorder %s25, 8
      // Predicated region
      $region33: #{tpu_custom_call.1} parent=5 // pred_check
        %p291 = pneg %p290
      $region34: #{tpu_custom_call.1} parent=5 // pred_check_branch
        %293 = sbr.rel (%p291) target = $region36
      $region35: #{tpu_custom_call.1} parent=5 // pred_region
        // Predicated region
        $region37: #{tpu_custom_call.1} parent=35 // pred_check
          %p294 = pneg %p57
        $region38: #{tpu_custom_call.1} parent=35 // pred_check_branch
          %296 = sbr.rel (%p294) target = $region40
        $region39: #{tpu_custom_call.1} parent=35 // pred_region
          %s297 = sand.u32 %s47, 1
          %s298 = scalar_lea.sflag [#allocation6], %s297
          %s299 = sand.u32 %s47, 1
          %s300 = smul.addr %s299, 128
          %s301 = scalar_lea.vmem [#allocation5], %s300
          %s303 = ssub.s32 2048, 2048
          %304 = vsyncadd %s298, %s303
          %s305 = smul.addr %s32, 32
          %s306 = smul.addr %s305, 64
          %s307 = scalar_lea.hbm %s0, %s306
          %s308 = sshll.u32 %s301, 4
          %s309 = int_to_ptr.vmem [resolvable:$true] %s308
          %314 = dma.hbm_to_vmem [thread:$0]  %s307, 2048, %s309, %s298, 64, 64, 4
        $region40: #{tpu_custom_call.1} parent=35 // pred_fallthru
          _
        // Predicated region
        $region41: #{tpu_custom_call.1} parent=35 // pred_check
          %p315 = pneg %p85
        $region42: #{tpu_custom_call.1} parent=35 // pred_check_branch
          %317 = sbr.rel (%p315) target = $region44
        $region43: #{tpu_custom_call.1} parent=35 // pred_region
          %s318 = sand.u32 %s25, 1
          %s319 = scalar_lea.sflag [#allocation9], %s318
          %s320 = sand.u32 %s75, 1
          %s321 = smul.addr %s320, 64
          %s322 = scalar_lea.vmem [#allocation8], %s321
          %s323 = smul.u32 8, %s33
          %s325 = ssub.s32 1024, 1024
          %326 = vsyncadd %s319, %s325
          %s327 = smul.addr %s32, 32
          %s328 = sadd.s32 %s323, %s327
          %s329 = smul.addr %s328, 128
          %s330 = scalar_lea.hbm %s1, %s329
          %s331 = sshll.u32 %s322, 4
          %s332 = int_to_ptr.vmem [resolvable:$true] %s331
          %337 = dma.hbm_to_vmem [thread:$0]  %s330, 1024, %s332, %s319, 128, 128, 8
        $region44: #{tpu_custom_call.1} parent=35 // pred_fallthru
          _
      $region36: #{tpu_custom_call.1} parent=5 // pred_fallthru
        _
      %p338 = scmp.le.s32.totalorder 1, %s25
      %p339 = scmp.lt.s32.totalorder %s25, 9
      %p340 = pnand %p338, %p339
      %p341 = pneg %p340
      // Predicated region
      $region45: #{tpu_custom_call.1} parent=5 // pred_check
        _
      $region46: #{tpu_custom_call.1} parent=5 // pred_check_branch
        %343 = sbr.rel (%p340) target = $region48
      $region47: #{tpu_custom_call.1} parent=5 // pred_region
        %s344 = ssub.s32 %s25, 1
        %s345 = sand.u32 %s50, 1
        %s346 = scalar_lea.sflag [#allocation6], %s345
        %s347 = sand.u32 %s50, 1
        %s348 = smul.addr %s347, 128
        %s349 = scalar_lea.vmem [#allocation5], %s348
        // Predicated region
        $region49: #{tpu_custom_call.1} parent=47 // pred_check
          %p350 = pneg %p63
        $region50: #{tpu_custom_call.1} parent=47 // pred_check_branch
          %352 = sbr.rel (%p350) target = $region52
        $region51: #{tpu_custom_call.1} parent=47 // pred_region
          %353 = dma.done %s346, 2048
        $region52: #{tpu_custom_call.1} parent=47 // pred_fallthru
          _
        %s354 = sand.u32 %s30, 1
        %s355 = scalar_lea.sflag [#allocation9], %s354
        %s356 = sand.u32 %s78, 1
        %s357 = smul.addr %s356, 64
        %s358 = scalar_lea.vmem [#allocation8], %s357
        // Predicated region
        $region53: #{tpu_custom_call.1} parent=47 // pred_check
          %p359 = pneg %p91
        $region54: #{tpu_custom_call.1} parent=47 // pred_check_branch
          %361 = sbr.rel (%p359) target = $region56
        $region55: #{tpu_custom_call.1} parent=47 // pred_region
          %362 = dma.done %s355, 1024
        $region56: #{tpu_custom_call.1} parent=47 // pred_fallthru
          _
        // Predicated region
        $region57: #{tpu_custom_call.1} parent=47 // pred_check
          %p363 = pneg %p112
        $region58: #{tpu_custom_call.1} parent=47 // pred_check_branch
          %365 = sbr.rel (%p363) target = $region60
        $region59: #{tpu_custom_call.1} parent=47 // pred_region
          %366 = dma.done [#allocation9], 2048
        $region60: #{tpu_custom_call.1} parent=47 // pred_fallthru
          _
        // Predicated region
        $region61: #{tpu_custom_call.1} parent=47 // pred_check
          %p367 = pneg %p133
        $region62: #{tpu_custom_call.1} parent=47 // pred_check_branch
          %369 = sbr.rel (%p367) target = $region64
        $region63: #{tpu_custom_call.1} parent=47 // pred_region
          %370 = dma.done [#allocation12], 32
        $region64: #{tpu_custom_call.1} parent=47 // pred_fallthru
          _
        // Predicated region
        $region65: #{tpu_custom_call.1} parent=47 // pred_check
          %p371 = pneg %p154
        $region66: #{tpu_custom_call.1} parent=47 // pred_check_branch
          %373 = sbr.rel (%p371) target = $region68
        $region67: #{tpu_custom_call.1} parent=47 // pred_region
          %374 = dma.done [#allocation12], 1024
        $region68: #{tpu_custom_call.1} parent=47 // pred_fallthru
          _
        // Predicated region
        $region69: #{tpu_custom_call.1} parent=47 // pred_check
          %p375 = pneg %p175
        $region70: #{tpu_custom_call.1} parent=47 // pred_check_branch
          %377 = sbr.rel (%p375) target = $region72
        $region71: #{tpu_custom_call.1} parent=47 // pred_region
          %378 = dma.done [#allocation15], 16
        $region72: #{tpu_custom_call.1} parent=47 // pred_fallthru
          _
        %s379 = sand.u32 %s50, 1
        %s380 = scalar_lea.sflag [#allocation6], %s379
        %s381 = sand.u32 %s50, 1
        %s382 = smul.addr %s381, 128
        %s383 = scalar_lea.vmem [#allocation5], %s382
        %p384 = pneg %p63
        %p385 = pneg %p60
        %s386 = sand.u32 %s30, 1
        %s387 = scalar_lea.sflag [#allocation9], %s386
        %s388 = sand.u32 %s78, 1
        %s389 = smul.addr %s388, 64
        %s390 = scalar_lea.vmem [#allocation8], %s389
        %p391 = pneg %p91
        %p392 = pneg %p88
        %p393 = pneg %p112
        %p394 = pneg %p109
        %p395 = pneg %p133
        %p396 = pneg %p130
        %p397 = pneg %p154
        %p398 = pneg %p151
        %p399 = pneg %p175
        %p400 = pneg %p172
        %p401 = pneg %p196
        %p402 = pneg %p193
        %p403 = pneg %p224
        %p404 = pneg %p221
        %s405 = sand.u32 %s211, 1
        %s406 = scalar_lea.sflag [#allocation7], %s405
        %s407 = sand.u32 %s211, 1
        %s408 = smul.addr %s407, 64
        %s409 = scalar_lea.vmem [#allocation16], %s408
        %s410 = smul.u32 8, %s35
        %s411 = smul.u32 8, %s35
        %p413 = scmp.eq.s32.totalorder %s35, 0
        // Predicated region
        $region73: #{tpu_custom_call.1} parent=47 // pred_check
          %p414 = pneg %p413
        $region74: #{tpu_custom_call.1} parent=47 // pred_check_branch
          %416 = sbr.rel (%p414) target = $region76
        $region75: #{tpu_custom_call.1} parent=47 // pred_region
          %v417 = vld [vmem:[#allocation10] sm:$0xff]
          %v418 = vld [vmem:[#allocation10 + $0x8] sm:$0xff]
          %v419 = vld [vmem:[#allocation10 + $0x10] sm:$0xff]
          %v420 = vld [vmem:[#allocation10 + $0x18] sm:$0xff]
          %v421 = vld [vmem:[#allocation10 + $0x20] sm:$0xff]
          %v422 = vld [vmem:[#allocation10 + $0x28] sm:$0xff]
          %v423 = vld [vmem:[#allocation10 + $0x30] sm:$0xff]
          %v424 = vld [vmem:[#allocation10 + $0x38] sm:$0xff]
          %v425 = vld [vmem:[#allocation10 + $0x40] sm:$0xff]
          %v426 = vld [vmem:[#allocation10 + $0x48] sm:$0xff]
          %v427 = vld [vmem:[#allocation10 + $0x50] sm:$0xff]
          %v428 = vld [vmem:[#allocation10 + $0x58] sm:$0xff]
          %v429 = vld [vmem:[#allocation10 + $0x60] sm:$0xff]
          %v430 = vld [vmem:[#allocation10 + $0x68] sm:$0xff]
          %v431 = vld [vmem:[#allocation10 + $0x70] sm:$0xff]
          %v432 = vld [vmem:[#allocation10 + $0x78] sm:$0xff]
          %v433 = vld [vmem:[#allocation11] sm:$0x3]
          loop: start=0, step=1, limit=2
          $region77: #{tpu_custom_call.1} parent=75 // loop_pre_header
            _
          $region78: #{tpu_custom_call.1} parent=75 // loop_header
            %s435 = sphi 0, %s439
            %p436 = scmp.ge.s32.totalorder %s435, 2
          $region79: #{tpu_custom_call.1} parent=75 // loop_header_branch
            %438 = sbr.rel (%p436) target = $region83
          $region80: #{tpu_custom_call.1} parent=75 // loop_body
            %s440 = smul.u32 %s435, 128
            %s441 = sshra.s32 %s440, 3
            %s442 = sand.u32 %s440, 7
            %s443 = smul.addr %s441, 4
            %s444 = scalar_lea.vmem %s349, %s443 [#allocation5]
            %v445 = vld [vmem:[%s444] sm:$0xf]
            %v446 = vld [vmem:[%s444 + $0x4] sm:$0xf]
            %v447 = vld [vmem:[%s444 + $0x8] sm:$0xf]
            %v448 = vld [vmem:[%s444 + $0xc] sm:$0xf]
            %v449 = vld [vmem:[%s444 + $0x10] sm:$0xf]
            %v450 = vld [vmem:[%s444 + $0x14] sm:$0xf]
            %v451 = vld [vmem:[%s444 + $0x18] sm:$0xf]
            %v452 = vld [vmem:[%s444 + $0x1c] sm:$0xf]
            %v453 = vld [vmem:[%s444 + $0x20] sm:$0xf]
            %v454 = vld [vmem:[%s444 + $0x24] sm:$0xf]
            %v455 = vld [vmem:[%s444 + $0x28] sm:$0xf]
            %v456 = vld [vmem:[%s444 + $0x2c] sm:$0xf]
            %v457 = vld [vmem:[%s444 + $0x30] sm:$0xf]
            %v458 = vld [vmem:[%s444 + $0x34] sm:$0xf]
            %v459 = vld [vmem:[%s444 + $0x38] sm:$0xf]
            %v460 = vld [vmem:[%s444 + $0x3c] sm:$0xf]
            %v462 = vlaneseq
            %v463 = vshrl.u32 %v462, 7
            %v464 = vsub.s32 0, %v463
            %v465 = vrot.slane %v433, %v464
            %v466 = vlaneseq
            %v467 = vshrl.u32 %v466, 7
            %v468 = vsub.s32 1, %v467
            %v469 = vrot.slane %v433, %v468
            %v488 = vunpack.c.l.b16 %v445
            %v489 = vunpack.c.l.b16 %v446
            %v490 = vunpack.c.l.b16 %v447
            %v491 = vunpack.c.l.b16 %v448
            %v492 = vunpack.c.l.b16 %v449
            %v493 = vunpack.c.l.b16 %v450
            %v494 = vunpack.c.l.b16 %v451
            %v495 = vunpack.c.l.b16 %v452
            %v496 = vunpack.c.l.b16 %v453
            %v497 = vunpack.c.l.b16 %v454
            %v498 = vunpack.c.l.b16 %v455
            %v499 = vunpack.c.l.b16 %v456
            %v500 = vunpack.c.l.b16 %v457
            %v501 = vunpack.c.l.b16 %v458
            %v502 = vunpack.c.l.b16 %v459
            %v503 = vunpack.c.l.b16 %v460
            %v504 = vpack.c.b16 %v489, %v488
            %v505 = vpack.c.b16 %v491, %v490
            %v506 = vpack.c.b16 %v493, %v492
            %v507 = vpack.c.b16 %v495, %v494
            %v508 = vpack.c.b16 %v497, %v496
            %v509 = vpack.c.b16 %v499, %v498
            %v510 = vpack.c.b16 %v501, %v500
            %v511 = vpack.c.b16 %v503, %v502
            %v536 = vunpack.c.l.b16 %v417
            %v537 = vunpack.c.h.b16 %v417
            %v538 = vunpack.c.l.b16 %v418
            %v539 = vunpack.c.h.b16 %v418
            %v540 = vunpack.c.l.b16 %v419
            %v541 = vunpack.c.h.b16 %v419
            %v542 = vunpack.c.l.b16 %v420
            %v543 = vunpack.c.h.b16 %v420
            %v544 = vunpack.c.l.b16 %v421
            %v545 = vunpack.c.h.b16 %v421
            %v546 = vunpack.c.l.b16 %v422
            %v547 = vunpack.c.h.b16 %v422
            %v548 = vunpack.c.l.b16 %v423
            %v549 = vunpack.c.h.b16 %v423
            %v550 = vunpack.c.l.b16 %v424
            %v551 = vunpack.c.h.b16 %v424
            %v552 = vunpack.c.l.b16 %v425
            %v553 = vunpack.c.h.b16 %v425
            %v554 = vunpack.c.l.b16 %v426
            %v555 = vunpack.c.h.b16 %v426
            %v556 = vunpack.c.l.b16 %v427
            %v557 = vunpack.c.h.b16 %v427
            %v558 = vunpack.c.l.b16 %v428
            %v559 = vunpack.c.h.b16 %v428
            %v560 = vunpack.c.l.b16 %v429
            %v561 = vunpack.c.h.b16 %v429
            %v562 = vunpack.c.l.b16 %v430
            %v563 = vunpack.c.h.b16 %v430
            %v564 = vunpack.c.l.b16 %v431
            %v565 = vunpack.c.h.b16 %v431
            %v566 = vunpack.c.l.b16 %v432
            %v567 = vunpack.c.h.b16 %v432
            %v568 = vpack.c.b16 %v538, %v536
            %v569 = vpack.c.b16 %v539, %v537
            %v570 = vpack.c.b16 %v542, %v540
            %v571 = vpack.c.b16 %v543, %v541
            %v572 = vpack.c.b16 %v546, %v544
            %v573 = vpack.c.b16 %v547, %v545
            %v574 = vpack.c.b16 %v550, %v548
            %v575 = vpack.c.b16 %v551, %v549
            %v576 = vpack.c.b16 %v554, %v552
            %v577 = vpack.c.b16 %v555, %v553
            %v578 = vpack.c.b16 %v558, %v556
            %v579 = vpack.c.b16 %v559, %v557
            %v580 = vpack.c.b16 %v562, %v560
            %v581 = vpack.c.b16 %v563, %v561
            %v582 = vpack.c.b16 %v566, %v564
            %v583 = vpack.c.b16 %v567, %v565
            %600 = vmatprep.subr.bf16.mxu0 %v569
            %601 = vmatpush1.bf16.msra.mxu0 %v568
            %602 = vmatprep.subr.bf16.mxu0 %v571
            %603 = vmatpush1.bf16.msra.mxu0 %v570
            %604 = vmatprep.subr.bf16.mxu0 %v573
            %605 = vmatpush1.bf16.msra.mxu0 %v572
            %606 = vmatprep.subr.bf16.mxu0 %v575
            %607 = vmatpush1.bf16.msra.mxu0 %v574
            %608 = vmatprep.subr.bf16.mxu0 %v577
            %609 = vmatpush1.bf16.msra.mxu0 %v576
            %610 = vmatprep.subr.bf16.mxu0 %v579
            %611 = vmatpush1.bf16.msra.mxu0 %v578
            %612 = vmatprep.subr.bf16.mxu0 %v581
            %613 = vmatpush1.bf16.msra.mxu0 %v580
            %614 = vmatprep.subr.bf16.mxu0 %v583
            %615 = vmatpush1.bf16.msra.mxu0 %v582
            %616 = vmatprep.subr.bf16.mxu0 0
            %617 = vmatpush1.bf16.msra.mxu0 0
            %618 = vmatprep.subr.bf16.mxu0 0
            %619 = vmatpush1.bf16.msra.mxu0 0
            %620 = vmatprep.subr.bf16.mxu0 0
            %621 = vmatpush1.bf16.msra.mxu0 0
            %622 = vmatprep.subr.bf16.mxu0 0
            %623 = vmatpush1.bf16.msra.mxu0 0
            %624 = vmatprep.subr.bf16.mxu0 0
            %625 = vmatpush1.bf16.msra.mxu0 0
            %626 = vmatprep.subr.bf16.mxu0 0
            %627 = vmatpush1.bf16.msra.mxu0 0
            %628 = vmatprep.subr.bf16.mxu0 0
            %629 = vmatpush1.bf16.msra.mxu0 0
            %630 = vmatprep.subr.bf16.mxu0 0
            %631 = vmatpush1.bf16.msra.mxu0 0
            %632 = vmatprep.mubr.bf16.mxu0 0
            %633 = vmatmul.mubr.bf16.gmra.mrb[0].mxu0 %v504
            %v634 = vpop.f32.mrb[0].mxu0
            %v635 = vadd.f32 %v465, %v634
            %v636 = vpop.f32.mrb[0].mxu0
            %v637 = vadd.f32 %v469, %v636
            %v638 = vpop.f32.mrb[0].mxu0
            %v639 = vadd.f32 %v465, %v638
            %v640 = vpop.f32.mrb[0].mxu0
            %v641 = vadd.f32 %v469, %v640
            %642 = vmatprep.mubr.bf16.mxu0 0
            %643 = vmatmul.mubr.bf16.gmra.mrb[0].mxu0 %v505
            %v644 = vpop.f32.mrb[0].mxu0
            %v645 = vadd.f32 %v465, %v644
            %v646 = vpop.f32.mrb[0].mxu0
            %v647 = vadd.f32 %v469, %v646
            %v648 = vpop.f32.mrb[0].mxu0
            %v649 = vadd.f32 %v465, %v648
            %v650 = vpop.f32.mrb[0].mxu0
            %v651 = vadd.f32 %v469, %v650
            %652 = vmatprep.mubr.bf16.mxu0 0
            %653 = vmatmul.mubr.bf16.gmra.mrb[0].mxu0 %v506
            %v654 = vpop.f32.mrb[0].mxu0
            %v655 = vadd.f32 %v465, %v654
            %v656 = vpop.f32.mrb[0].mxu0
            %v657 = vadd.f32 %v469, %v656
            %v658 = vpop.f32.mrb[0].mxu0
            %v659 = vadd.f32 %v465, %v658
            %v660 = vpop.f32.mrb[0].mxu0
            %v661 = vadd.f32 %v469, %v660
            %662 = vmatprep.mubr.bf16.mxu0 0
            %663 = vmatmul.mubr.bf16.gmra.mrb[0].mxu0 %v507
            %v664 = vpop.f32.mrb[0].mxu0
            %v665 = vadd.f32 %v465, %v664
            %v666 = vpop.f32.mrb[0].mxu0
            %v667 = vadd.f32 %v469, %v666
            %v668 = vpop.f32.mrb[0].mxu0
            %v669 = vadd.f32 %v465, %v668
            %v670 = vpop.f32.mrb[0].mxu0
            %v671 = vadd.f32 %v469, %v670
            %672 = vmatprep.mubr.bf16.mxu0 0
            %673 = vmatmul.mubr.bf16.gmra.mrb[0].mxu0 %v508
            %v674 = vpop.f32.mrb[0].mxu0
            %v675 = vadd.f32 %v465, %v674
            %v676 = vpop.f32.mrb[0].mxu0
            %v677 = vadd.f32 %v469, %v676
            %v678 = vpop.f32.mrb[0].mxu0
            %v679 = vadd.f32 %v465, %v678
            %v680 = vpop.f32.mrb[0].mxu0
            %v681 = vadd.f32 %v469, %v680
            %682 = vmatprep.mubr.bf16.mxu0 0
            %683 = vmatmul.mubr.bf16.gmra.mrb[0].mxu0 %v509
            %v684 = vpop.f32.mrb[0].mxu0
            %v685 = vadd.f32 %v465, %v684
            %v686 = vpop.f32.mrb[0].mxu0
            %v687 = vadd.f32 %v469, %v686
            %v688 = vpop.f32.mrb[0].mxu0
            %v689 = vadd.f32 %v465, %v688
            %v690 = vpop.f32.mrb[0].mxu0
            %v691 = vadd.f32 %v469, %v690
            %692 = vmatprep.mubr.bf16.mxu0 0
            %693 = vmatmul.mubr.bf16.gmra.mrb[0].mxu0 %v510
            %v694 = vpop.f32.mrb[0].mxu0
            %v695 = vadd.f32 %v465, %v694
            %v696 = vpop.f32.mrb[0].mxu0
            %v697 = vadd.f32 %v469, %v696
            %v698 = vpop.f32.mrb[0].mxu0
            %v699 = vadd.f32 %v465, %v698
            %v700 = vpop.f32.mrb[0].mxu0
            %v701 = vadd.f32 %v469, %v700
            %702 = vmatprep.mubr.bf16.mxu0 0
            %703 = vmatmul.mubr.bf16.gmra.mrb[0].mxu0 %v511
            %v704 = vpop.f32.mrb[0].mxu0
            %v705 = vadd.f32 %v465, %v704
            %v706 = vpop.f32.mrb[0].mxu0
            %v707 = vadd.f32 %v469, %v706
            %v708 = vpop.f32.mrb[0].mxu0
            %v709 = vadd.f32 %v465, %v708
            %v710 = vpop.f32.mrb[0].mxu0
            %v711 = vadd.f32 %v469, %v710
            %712 = vdwg.mxu0
            %v713 = vmax.f32 %v635, 0.0
            %v714 = vmax.f32 %v637, 0.0
            %v715 = vmax.f32 %v639, 0.0
            %v716 = vmax.f32 %v641, 0.0
            %v717 = vmax.f32 %v645, 0.0
            %v718 = vmax.f32 %v647, 0.0
            %v719 = vmax.f32 %v649, 0.0
            %v720 = vmax.f32 %v651, 0.0
            %v721 = vmax.f32 %v655, 0.0
            %v722 = vmax.f32 %v657, 0.0
            %v723 = vmax.f32 %v659, 0.0
            %v724 = vmax.f32 %v661, 0.0
            %v725 = vmax.f32 %v665, 0.0
            %v726 = vmax.f32 %v667, 0.0
            %v727 = vmax.f32 %v669, 0.0
            %v728 = vmax.f32 %v671, 0.0
            %v729 = vmax.f32 %v675, 0.0
            %v730 = vmax.f32 %v677, 0.0
            %v731 = vmax.f32 %v679, 0.0
            %v732 = vmax.f32 %v681, 0.0
            %v733 = vmax.f32 %v685, 0.0
            %v734 = vmax.f32 %v687, 0.0
            %v735 = vmax.f32 %v689, 0.0
            %v736 = vmax.f32 %v691, 0.0
            %v737 = vmax.f32 %v695, 0.0
            %v738 = vmax.f32 %v697, 0.0
            %v739 = vmax.f32 %v699, 0.0
            %v740 = vmax.f32 %v701, 0.0
            %v741 = vmax.f32 %v705, 0.0
            %v742 = vmax.f32 %v707, 0.0
            %v743 = vmax.f32 %v709, 0.0
            %v744 = vmax.f32 %v711, 0.0
            %v745 = vpack.c.bf16 %v715, %v713
            %v746 = vpack.c.bf16 %v716, %v714
            %v747 = vpack.c.bf16 %v719, %v717
            %v748 = vpack.c.bf16 %v720, %v718
            %v749 = vpack.c.bf16 %v723, %v721
            %v750 = vpack.c.bf16 %v724, %v722
            %v751 = vpack.c.bf16 %v727, %v725
            %v752 = vpack.c.bf16 %v728, %v726
            %v753 = vpack.c.bf16 %v731, %v729
            %v754 = vpack.c.bf16 %v732, %v730
            %v755 = vpack.c.bf16 %v735, %v733
            %v756 = vpack.c.bf16 %v736, %v734
            %v757 = vpack.c.bf16 %v739, %v737
            %v758 = vpack.c.bf16 %v740, %v738
            %v759 = vpack.c.bf16 %v743, %v741
            %v760 = vpack.c.bf16 %v744, %v742
            %s761 = sshra.s32 %s440, 4
            %s762 = sand.u32 %s440, 15
            %s763 = smul.addr %s761, 8
            %s764 = scalar_lea.vmem [#allocation2], %s763
            %765 = vst [vmem:[%s764] sm:$0xff] %v745
            %766 = vst [vmem:[%s764 + $0x8] sm:$0xff] %v747
            %767 = vst [vmem:[%s764 + $0x10] sm:$0xff] %v749
            %768 = vst [vmem:[%s764 + $0x18] sm:$0xff] %v751
            %769 = vst [vmem:[%s764 + $0x20] sm:$0xff] %v753
            %770 = vst [vmem:[%s764 + $0x28] sm:$0xff] %v755
            %771 = vst [vmem:[%s764 + $0x30] sm:$0xff] %v757
            %772 = vst [vmem:[%s764 + $0x38] sm:$0xff] %v759
            %s773 = smul.addr %s761, 8
            %s774 = scalar_lea.vmem [#allocation3], %s773
            %775 = vst [vmem:[%s774] sm:$0xff] %v746
            %776 = vst [vmem:[%s774 + $0x8] sm:$0xff] %v748
            %777 = vst [vmem:[%s774 + $0x10] sm:$0xff] %v750
            %778 = vst [vmem:[%s774 + $0x18] sm:$0xff] %v752
            %779 = vst [vmem:[%s774 + $0x20] sm:$0xff] %v754
            %780 = vst [vmem:[%s774 + $0x28] sm:$0xff] %v756
            %781 = vst [vmem:[%s774 + $0x30] sm:$0xff] %v758
            %782 = vst [vmem:[%s774 + $0x38] sm:$0xff] %v760
          $region81: #{tpu_custom_call.1} parent=75 // loop_footer
            %s439 = sadd.s32 1, %s435
          $region82: #{tpu_custom_call.1} parent=75 // loop_footer_branch
            %434 = sbr.rel target = $region78
          $region83: #{tpu_custom_call.1} parent=75 // loop_exit
            _
        $region76: #{tpu_custom_call.1} parent=47 // pred_fallthru
          _
        %v783 = vld [vmem:[%s358] sm:$0xff]
        %v784 = vld [vmem:[%s358 + $0x8] sm:$0xff]
        %v785 = vld [vmem:[%s358 + $0x10] sm:$0xff]
        %v786 = vld [vmem:[%s358 + $0x18] sm:$0xff]
        %v787 = vld [vmem:[%s358 + $0x20] sm:$0xff]
        %v788 = vld [vmem:[%s358 + $0x28] sm:$0xff]
        %v789 = vld [vmem:[%s358 + $0x30] sm:$0xff]
        %v790 = vld [vmem:[%s358 + $0x38] sm:$0xff]
        %v791 = vpack.c.bf16 %v784, %v783
        %v792 = vpack.c.bf16 %v786, %v785
        %v793 = vpack.c.bf16 %v788, %v787
        %v794 = vpack.c.bf16 %v790, %v789
        %v795 = vld [vmem:[#allocation13] sm:$0xf]
        %v796 = vld [vmem:[#allocation13 + $0x4] sm:$0xf]
        %v797 = vld [vmem:[#allocation13 + $0x8] sm:$0xf]
        %v798 = vld [vmem:[#allocation13 + $0xc] sm:$0xf]
        %v799 = vld [vmem:[#allocation13 + $0x10] sm:$0xf]
        %v800 = vld [vmem:[#allocation13 + $0x14] sm:$0xf]
        %v801 = vld [vmem:[#allocation13 + $0x18] sm:$0xf]
        %v802 = vld [vmem:[#allocation13 + $0x1c] sm:$0xf]
        %v803 = vld [vmem:[#allocation13 + $0x20] sm:$0xf]
        %v804 = vld [vmem:[#allocation13 + $0x24] sm:$0xf]
        %v805 = vld [vmem:[#allocation13 + $0x28] sm:$0xf]
        %v806 = vld [vmem:[#allocation13 + $0x2c] sm:$0xf]
        %v807 = vld [vmem:[#allocation13 + $0x30] sm:$0xf]
        %v808 = vld [vmem:[#allocation13 + $0x34] sm:$0xf]
        %v809 = vld [vmem:[#allocation13 + $0x38] sm:$0xf]
        %v810 = vld [vmem:[#allocation13 + $0x3c] sm:$0xf]
        %v811 = vld [vmem:[#allocation14] sm:$0x1]
        %v813 = vlaneseq
        %v814 = vshrl.u32 %v813, 7
        %v815 = vsub.s32 0, %v814
        %v816 = vrot.slane %v811, %v815
        %v834 = vunpack.c.l.b16 %v795
        %v835 = vunpack.c.l.b16 %v796
        %v836 = vunpack.c.l.b16 %v797
        %v837 = vunpack.c.l.b16 %v798
        %v838 = vunpack.c.l.b16 %v799
        %v839 = vunpack.c.l.b16 %v800
        %v840 = vunpack.c.l.b16 %v801
        %v841 = vunpack.c.l.b16 %v802
        %v842 = vunpack.c.l.b16 %v803
        %v843 = vunpack.c.l.b16 %v804
        %v844 = vunpack.c.l.b16 %v805
        %v845 = vunpack.c.l.b16 %v806
        %v846 = vunpack.c.l.b16 %v807
        %v847 = vunpack.c.l.b16 %v808
        %v848 = vunpack.c.l.b16 %v809
        %v849 = vunpack.c.l.b16 %v810
        %v850 = vpack.c.b16 %v835, %v834
        %v851 = vpack.c.b16 %v837, %v836
        %v852 = vpack.c.b16 %v839, %v838
        %v853 = vpack.c.b16 %v841, %v840
        %v854 = vpack.c.b16 %v843, %v842
        %v855 = vpack.c.b16 %v845, %v844
        %v856 = vpack.c.b16 %v847, %v846
        %v857 = vpack.c.b16 %v849, %v848
        %866 = vmatprep.subr.bf16.mxu0 0
        %867 = vmatpush1.bf16.msra.mxu0 %v850
        %868 = vmatprep.subr.bf16.mxu0 0
        %869 = vmatpush1.bf16.msra.mxu0 %v851
        %870 = vmatprep.subr.bf16.mxu0 0
        %871 = vmatpush1.bf16.msra.mxu0 %v852
        %872 = vmatprep.subr.bf16.mxu0 0
        %873 = vmatpush1.bf16.msra.mxu0 %v853
        %874 = vmatprep.subr.bf16.mxu0 0
        %875 = vmatpush1.bf16.msra.mxu0 %v854
        %876 = vmatprep.subr.bf16.mxu0 0
        %877 = vmatpush1.bf16.msra.mxu0 %v855
        %878 = vmatprep.subr.bf16.mxu0 0
        %879 = vmatpush1.bf16.msra.mxu0 %v856
        %880 = vmatprep.subr.bf16.mxu0 0
        %881 = vmatpush1.bf16.msra.mxu0 %v857
        %882 = vmatprep.subr.bf16.mxu0 0
        %883 = vmatpush1.bf16.msra.mxu0 0
        %884 = vmatprep.subr.bf16.mxu0 0
        %885 = vmatpush1.bf16.msra.mxu0 0
        %886 = vmatprep.subr.bf16.mxu0 0
        %887 = vmatpush1.bf16.msra.mxu0 0
        %888 = vmatprep.subr.bf16.mxu0 0
        %889 = vmatpush1.bf16.msra.mxu0 0
        %890 = vmatprep.subr.bf16.mxu0 0
        %891 = vmatpush1.bf16.msra.mxu0 0
        %892 = vmatprep.subr.bf16.mxu0 0
        %893 = vmatpush1.bf16.msra.mxu0 0
        %894 = vmatprep.subr.bf16.mxu0 0
        %895 = vmatpush1.bf16.msra.mxu0 0
        %896 = vmatprep.subr.bf16.mxu0 0
        %897 = vmatpush1.bf16.msra.mxu0 0
        %898 = vmatprep.mubr.bf16.mxu0 0
        %899 = vmatmul.mubr.bf16.gmra.mrb[0].mxu0 %v791
        %v900 = vpop.f32.mrb[0].mxu0
        %v901 = vadd.f32 %v816, %v900
        %v902 = vpop.f32.mrb[0].mxu0
        %v903 = vpop.f32.mrb[0].mxu0
        %v904 = vadd.f32 %v816, %v903
        %v905 = vpop.f32.mrb[0].mxu0
        %906 = vmatprep.mubr.bf16.mxu0 0
        %907 = vmatmul.mubr.bf16.gmra.mrb[0].mxu0 %v792
        %v908 = vpop.f32.mrb[0].mxu0
        %v909 = vadd.f32 %v816, %v908
        %v910 = vpop.f32.mrb[0].mxu0
        %v911 = vpop.f32.mrb[0].mxu0
        %v912 = vadd.f32 %v816, %v911
        %v913 = vpop.f32.mrb[0].mxu0
        %914 = vmatprep.mubr.bf16.mxu0 0
        %915 = vmatmul.mubr.bf16.gmra.mrb[0].mxu0 %v793
        %v916 = vpop.f32.mrb[0].mxu0
        %v917 = vadd.f32 %v816, %v916
        %v918 = vpop.f32.mrb[0].mxu0
        %v919 = vpop.f32.mrb[0].mxu0
        %v920 = vadd.f32 %v816, %v919
        %v921 = vpop.f32.mrb[0].mxu0
        %922 = vmatprep.mubr.bf16.mxu0 0
        %923 = vmatmul.mubr.bf16.gmra.mrb[0].mxu0 %v794
        %v924 = vpop.f32.mrb[0].mxu0
        %v925 = vadd.f32 %v816, %v924
        %v926 = vpop.f32.mrb[0].mxu0
        %v927 = vpop.f32.mrb[0].mxu0
        %v928 = vadd.f32 %v816, %v927
        %v929 = vpop.f32.mrb[0].mxu0
        %930 = vdwg.mxu0
        %v931 = vmax.f32 %v901, 0.0
        %v932 = vmax.f32 %v904, 0.0
        %v933 = vmax.f32 %v909, 0.0
        %v934 = vmax.f32 %v912, 0.0
        %v935 = vmax.f32 %v917, 0.0
        %v936 = vmax.f32 %v920, 0.0
        %v937 = vmax.f32 %v925, 0.0
        %v938 = vmax.f32 %v928, 0.0
        %v939 = vpack.c.bf16 %v932, %v931
        %v940 = vpack.c.bf16 %v934, %v933
        %v941 = vpack.c.bf16 %v936, %v935
        %v942 = vpack.c.bf16 %v938, %v937
        %v943 = vld [vmem:[#allocation2] sm:$0xff]
        %v944 = vld [vmem:[#allocation2 + $0x8] sm:$0xff]
        %v945 = vld [vmem:[#allocation2 + $0x10] sm:$0xff]
        %v946 = vld [vmem:[#allocation2 + $0x18] sm:$0xff]
        %v947 = vld [vmem:[#allocation2 + $0x20] sm:$0xff]
        %v948 = vld [vmem:[#allocation2 + $0x28] sm:$0xff]
        %v949 = vld [vmem:[#allocation2 + $0x30] sm:$0xff]
        %v950 = vld [vmem:[#allocation2 + $0x38] sm:$0xff]
        %v951 = vld [vmem:[#allocation2 + $0x40] sm:$0xff]
        %v952 = vld [vmem:[#allocation2 + $0x48] sm:$0xff]
        %v953 = vld [vmem:[#allocation2 + $0x50] sm:$0xff]
        %v954 = vld [vmem:[#allocation2 + $0x58] sm:$0xff]
        %v955 = vld [vmem:[#allocation2 + $0x60] sm:$0xff]
        %v956 = vld [vmem:[#allocation2 + $0x68] sm:$0xff]
        %v957 = vld [vmem:[#allocation2 + $0x70] sm:$0xff]
        %v958 = vld [vmem:[#allocation2 + $0x78] sm:$0xff]
        %959 = vmatprep.subr.bf16.mxu0 0
        %960 = vmatpush1.bf16.xpose.msra.mxu0 %v943
        %961 = vmatprep.subr.bf16.mxu0 0
        %962 = vmatpush1.bf16.xpose.msra.mxu0 %v944
        %963 = vmatprep.subr.bf16.mxu0 0
        %964 = vmatpush1.bf16.xpose.msra.mxu0 %v945
        %965 = vmatprep.subr.bf16.mxu0 0
        %966 = vmatpush1.bf16.xpose.msra.mxu0 %v946
        %967 = vmatprep.subr.bf16.mxu0 0
        %968 = vmatpush1.bf16.xpose.msra.mxu0 %v947
        %969 = vmatprep.subr.bf16.mxu0 0
        %970 = vmatpush1.bf16.xpose.msra.mxu0 %v948
        %971 = vmatprep.subr.bf16.mxu0 0
        %972 = vmatpush1.bf16.xpose.msra.mxu0 %v949
        %973 = vmatprep.subr.bf16.mxu0 0
        %974 = vmatpush1.bf16.xpose.msra.mxu0 %v950
        %975 = vmatprep.subr.bf16.mxu0 0
        %976 = vmatpush1.bf16.xpose.msra.mxu0 %v951
        %977 = vmatprep.subr.bf16.mxu0 0
        %978 = vmatpush1.bf16.xpose.msra.mxu0 %v952
        %979 = vmatprep.subr.bf16.mxu0 0
        %980 = vmatpush1.bf16.xpose.msra.mxu0 %v953
        %981 = vmatprep.subr.bf16.mxu0 0
        %982 = vmatpush1.bf16.xpose.msra.mxu0 %v954
        %983 = vmatprep.subr.bf16.mxu0 0
        %984 = vmatpush1.bf16.xpose.msra.mxu0 %v955
        %985 = vmatprep.subr.bf16.mxu0 0
        %986 = vmatpush1.bf16.xpose.msra.mxu0 %v956
        %987 = vmatprep.subr.bf16.mxu0 0
        %988 = vmatpush1.bf16.xpose.msra.mxu0 %v957
        %989 = vmatprep.subr.bf16.mxu0 0
        %990 = vmatpush1.bf16.xpose.msra.mxu0 %v958
        %991 = vmatprep.mubr.bf16.mxu0 0
        %992 = vmatmul.mubr.bf16.gmra.mrb[0].mxu0 %v939
        %v993 = vpop.f32.mrb[0].mxu0
        %v994 = vadd.f32 0.0, %v993
        %v995 = vpop.f32.mrb[0].mxu0
        %v996 = vadd.f32 0.0, %v995
        %v997 = vpop.f32.mrb[0].mxu0
        %v998 = vadd.f32 0.0, %v997
        %v999 = vpop.f32.mrb[0].mxu0
        %v1000 = vadd.f32 0.0, %v999
        %1001 = vmatprep.mubr.bf16.mxu0 0
        %1002 = vmatmul.mubr.bf16.gmra.mrb[0].mxu0 %v940
        %v1003 = vpop.f32.mrb[0].mxu0
        %v1004 = vadd.f32 0.0, %v1003
        %v1005 = vpop.f32.mrb[0].mxu0
        %v1006 = vadd.f32 0.0, %v1005
        %v1007 = vpop.f32.mrb[0].mxu0
        %v1008 = vadd.f32 0.0, %v1007
        %v1009 = vpop.f32.mrb[0].mxu0
        %v1010 = vadd.f32 0.0, %v1009
        %1011 = vmatprep.mubr.bf16.mxu0 0
        %1012 = vmatmul.mubr.bf16.gmra.mrb[0].mxu0 %v941
        %v1013 = vpop.f32.mrb[0].mxu0
        %v1014 = vadd.f32 0.0, %v1013
        %v1015 = vpop.f32.mrb[0].mxu0
        %v1016 = vadd.f32 0.0, %v1015
        %v1017 = vpop.f32.mrb[0].mxu0
        %v1018 = vadd.f32 0.0, %v1017
        %v1019 = vpop.f32.mrb[0].mxu0
        %v1020 = vadd.f32 0.0, %v1019
        %1021 = vmatprep.mubr.bf16.mxu0 0
        %1022 = vmatmul.mubr.bf16.gmra.mrb[0].mxu0 %v942
        %v1023 = vpop.f32.mrb[0].mxu0
        %v1024 = vadd.f32 0.0, %v1023
        %v1025 = vpop.f32.mrb[0].mxu0
        %v1026 = vadd.f32 0.0, %v1025
        %v1027 = vpop.f32.mrb[0].mxu0
        %v1028 = vadd.f32 0.0, %v1027
        %v1029 = vpop.f32.mrb[0].mxu0
        %v1030 = vadd.f32 0.0, %v1029
        %1031 = vdwg.mxu0
        %v1032 = vmax.f32 %v994, %v996
        %1033 = vmax.xlane.f32.xlu0 %v1032
        %v1034 = vpop.xlane.xlu0 %1033
        %v1035 = vmax.f32 %v998, %v1000
        %1036 = vmax.xlane.f32.xlu0 %v1035
        %v1037 = vpop.xlane.xlu0 %1036
        %v1038 = vmax.f32 %v1004, %v1006
        %1039 = vmax.xlane.f32.xlu0 %v1038
        %v1040 = vpop.xlane.xlu0 %1039
        %v1041 = vmax.f32 %v1008, %v1010
        %1042 = vmax.xlane.f32.xlu0 %v1041
        %v1043 = vpop.xlane.xlu0 %1042
        %v1044 = vmax.f32 %v1014, %v1016
        %1045 = vmax.xlane.f32.xlu0 %v1044
        %v1046 = vpop.xlane.xlu0 %1045
        %v1047 = vmax.f32 %v1018, %v1020
        %1048 = vmax.xlane.f32.xlu0 %v1047
        %v1049 = vpop.xlane.xlu0 %1048
        %v1050 = vmax.f32 %v1024, %v1026
        %1051 = vmax.xlane.f32.xlu0 %v1050
        %v1052 = vpop.xlane.xlu0 %1051
        %v1053 = vmax.f32 %v1028, %v1030
        %1054 = vmax.xlane.f32.xlu0 %v1053
        %v1055 = vpop.xlane.xlu0 %1054
        %v1056 = vsub.f32 %v994, %v1034
        %v1057 = vsub.f32 %v996, %v1034
        %v1058 = vsub.f32 %v998, %v1037
        %v1059 = vsub.f32 %v1000, %v1037
        %v1060 = vsub.f32 %v1004, %v1040
        %v1061 = vsub.f32 %v1006, %v1040
        %v1062 = vsub.f32 %v1008, %v1043
        %v1063 = vsub.f32 %v1010, %v1043
        %v1064 = vsub.f32 %v1014, %v1046
        %v1065 = vsub.f32 %v1016, %v1046
        %v1066 = vsub.f32 %v1018, %v1049
        %v1067 = vsub.f32 %v1020, %v1049
        %v1068 = vsub.f32 %v1024, %v1052
        %v1069 = vsub.f32 %v1026, %v1052
        %v1070 = vsub.f32 %v1028, %v1055
        %v1071 = vsub.f32 %v1030, %v1055
        %v1072 = vpack.c.bf16 %v1058, %v1056
        %v1073 = vpack.c.bf16 %v1059, %v1057
        %v1074 = vpack.c.bf16 %v1062, %v1060
        %v1075 = vpack.c.bf16 %v1063, %v1061
        %v1076 = vpack.c.bf16 %v1066, %v1064
        %v1077 = vpack.c.bf16 %v1067, %v1065
        %v1078 = vpack.c.bf16 %v1070, %v1068
        %v1079 = vpack.c.bf16 %v1071, %v1069
        %v1081 = vmul.bf16 %v1072, 1069105081
        %v1082 = vpow.bf16.pop %v1081
        %v1084 = vmul.bf16 %v1073, 1069105081
        %v1085 = vpow.bf16.pop %v1084
        %v1087 = vmul.bf16 %v1074, 1069105081
        %v1088 = vpow.bf16.pop %v1087
        %v1090 = vmul.bf16 %v1075, 1069105081
        %v1091 = vpow.bf16.pop %v1090
        %v1093 = vmul.bf16 %v1076, 1069105081
        %v1094 = vpow.bf16.pop %v1093
        %v1096 = vmul.bf16 %v1077, 1069105081
        %v1097 = vpow.bf16.pop %v1096
        %v1099 = vmul.bf16 %v1078, 1069105081
        %v1100 = vpow.bf16.pop %v1099
        %v1102 = vmul.bf16 %v1079, 1069105081
        %v1103 = vpow.bf16.pop %v1102
        %v1104 = vunpack.c.l.bf16 %v1082
        %v1105 = vunpack.c.l.bf16 %v1085
        %v1106 = vunpack.c.h.bf16 %v1082
        %v1107 = vunpack.c.h.bf16 %v1085
        %v1108 = vunpack.c.l.bf16 %v1088
        %v1109 = vunpack.c.l.bf16 %v1091
        %v1110 = vunpack.c.h.bf16 %v1088
        %v1111 = vunpack.c.h.bf16 %v1091
        %v1112 = vunpack.c.l.bf16 %v1094
        %v1113 = vunpack.c.l.bf16 %v1097
        %v1114 = vunpack.c.h.bf16 %v1094
        %v1115 = vunpack.c.h.bf16 %v1097
        %v1116 = vunpack.c.l.bf16 %v1100
        %v1117 = vunpack.c.l.bf16 %v1103
        %v1118 = vunpack.c.h.bf16 %v1100
        %v1119 = vunpack.c.h.bf16 %v1103
        %v1120 = vadd.f32 %v1104, %v1105
        %1121 = vadd.xlane.f32.xlu0 %v1120
        %v1122 = vpop.xlane.xlu0 %1121
        %v1123 = vadd.f32 %v1106, %v1107
        %1124 = vadd.xlane.f32.xlu0 %v1123
        %v1125 = vpop.xlane.xlu0 %1124
        %v1126 = vadd.f32 %v1108, %v1109
        %1127 = vadd.xlane.f32.xlu0 %v1126
        %v1128 = vpop.xlane.xlu0 %1127
        %v1129 = vadd.f32 %v1110, %v1111
        %1130 = vadd.xlane.f32.xlu0 %v1129
        %v1131 = vpop.xlane.xlu0 %1130
        %v1132 = vadd.f32 %v1112, %v1113
        %1133 = vadd.xlane.f32.xlu0 %v1132
        %v1134 = vpop.xlane.xlu0 %1133
        %v1135 = vadd.f32 %v1114, %v1115
        %1136 = vadd.xlane.f32.xlu0 %v1135
        %v1137 = vpop.xlane.xlu0 %1136
        %v1138 = vadd.f32 %v1116, %v1117
        %1139 = vadd.xlane.f32.xlu0 %v1138
        %v1140 = vpop.xlane.xlu0 %1139
        %v1141 = vadd.f32 %v1118, %v1119
        %1142 = vadd.xlane.f32.xlu0 %v1141
        %v1143 = vpop.xlane.xlu0 %1142
        %v1144 = vrcp.pop %v1122
        %v1145 = vrcp.pop %v1125
        %v1146 = vrcp.pop %v1128
        %v1147 = vrcp.pop %v1131
        %v1148 = vrcp.pop %v1134
        %v1149 = vrcp.pop %v1137
        %v1150 = vrcp.pop %v1140
        %v1151 = vrcp.pop %v1143
        %v1152 = vpack.c.bf16 %v1145, %v1144
        %v1153 = vpack.c.bf16 %v1147, %v1146
        %v1154 = vpack.c.bf16 %v1149, %v1148
        %v1155 = vpack.c.bf16 %v1151, %v1150
        %v1156 = vmul.bf16 %v1082, %v1152
        %v1157 = vmul.bf16 %v1085, %v1152
        %v1158 = vmul.bf16 %v1088, %v1153
        %v1159 = vmul.bf16 %v1091, %v1153
        %v1160 = vmul.bf16 %v1094, %v1154
        %v1161 = vmul.bf16 %v1097, %v1154
        %v1162 = vmul.bf16 %v1100, %v1155
        %v1163 = vmul.bf16 %v1103, %v1155
        %v1164 = vld [vmem:[#allocation3] sm:$0xff]
        %v1165 = vld [vmem:[#allocation3 + $0x8] sm:$0xff]
        %v1166 = vld [vmem:[#allocation3 + $0x10] sm:$0xff]
        %v1167 = vld [vmem:[#allocation3 + $0x18] sm:$0xff]
        %v1168 = vld [vmem:[#allocation3 + $0x20] sm:$0xff]
        %v1169 = vld [vmem:[#allocation3 + $0x28] sm:$0xff]
        %v1170 = vld [vmem:[#allocation3 + $0x30] sm:$0xff]
        %v1171 = vld [vmem:[#allocation3 + $0x38] sm:$0xff]
        %v1172 = vld [vmem:[#allocation3 + $0x40] sm:$0xff]
        %v1173 = vld [vmem:[#allocation3 + $0x48] sm:$0xff]
        %v1174 = vld [vmem:[#allocation3 + $0x50] sm:$0xff]
        %v1175 = vld [vmem:[#allocation3 + $0x58] sm:$0xff]
        %v1176 = vld [vmem:[#allocation3 + $0x60] sm:$0xff]
        %v1177 = vld [vmem:[#allocation3 + $0x68] sm:$0xff]
        %v1178 = vld [vmem:[#allocation3 + $0x70] sm:$0xff]
        %v1179 = vld [vmem:[#allocation3 + $0x78] sm:$0xff]
        %1180 = vmatprep.subr.bf16.mxu0 0
        %1181 = vmatpush1.bf16.msra.mxu0 %v1164
        %1182 = vmatprep.subr.bf16.mxu0 0
        %1183 = vmatpush1.bf16.msra.mxu0 %v1165
        %1184 = vmatprep.subr.bf16.mxu0 0
        %1185 = vmatpush1.bf16.msra.mxu0 %v1166
        %1186 = vmatprep.subr.bf16.mxu0 0
        %1187 = vmatpush1.bf16.msra.mxu0 %v1167
        %1188 = vmatprep.subr.bf16.mxu0 0
        %1189 = vmatpush1.bf16.msra.mxu0 %v1168
        %1190 = vmatprep.subr.bf16.mxu0 0
        %1191 = vmatpush1.bf16.msra.mxu0 %v1169
        %1192 = vmatprep.subr.bf16.mxu0 0
        %1193 = vmatpush1.bf16.msra.mxu0 %v1170
        %1194 = vmatprep.subr.bf16.mxu0 0
        %1195 = vmatpush1.bf16.msra.mxu0 %v1171
        %1196 = vmatprep.subr.bf16.mxu0 0
        %1197 = vmatpush1.bf16.msra.mxu0 %v1172
        %1198 = vmatprep.subr.bf16.mxu0 0
        %1199 = vmatpush1.bf16.msra.mxu0 %v1173
        %1200 = vmatprep.subr.bf16.mxu0 0
        %1201 = vmatpush1.bf16.msra.mxu0 %v1174
        %1202 = vmatprep.subr.bf16.mxu0 0
        %1203 = vmatpush1.bf16.msra.mxu0 %v1175
        %1204 = vmatprep.subr.bf16.mxu0 0
        %1205 = vmatpush1.bf16.msra.mxu0 %v1176
        %1206 = vmatprep.subr.bf16.mxu0 0
        %1207 = vmatpush1.bf16.msra.mxu0 %v1177
        %1208 = vmatprep.subr.bf16.mxu0 0
        %1209 = vmatpush1.bf16.msra.mxu0 %v1178
        %1210 = vmatprep.subr.bf16.mxu0 0
        %1211 = vmatpush1.bf16.msra.mxu0 %v1179
        %1212 = vmatprep.mubr.bf16.mxu0 %v1157
        %1213 = vmatmul.mubr.bf16.gmra.mrb[0].mxu0 %v1156
        %v1214 = vpop.f32.mrb[0].mxu0
        %v1215 = vadd.f32 0.0, %v1214
        %v1216 = vpop.f32.mrb[0].mxu0
        %v1217 = vpop.f32.mrb[0].mxu0
        %v1218 = vadd.f32 0.0, %v1217
        %v1219 = vpop.f32.mrb[0].mxu0
        %1220 = vmatprep.mubr.bf16.mxu0 %v1159
        %1221 = vmatmul.mubr.bf16.gmra.mrb[0].mxu0 %v1158
        %v1222 = vpop.f32.mrb[0].mxu0
        %v1223 = vadd.f32 0.0, %v1222
        %v1224 = vpop.f32.mrb[0].mxu0
        %v1225 = vpop.f32.mrb[0].mxu0
        %v1226 = vadd.f32 0.0, %v1225
        %v1227 = vpop.f32.mrb[0].mxu0
        %1228 = vmatprep.mubr.bf16.mxu0 %v1161
        %1229 = vmatmul.mubr.bf16.gmra.mrb[0].mxu0 %v1160
        %v1230 = vpop.f32.mrb[0].mxu0
        %v1231 = vadd.f32 0.0, %v1230
        %v1232 = vpop.f32.mrb[0].mxu0
        %v1233 = vpop.f32.mrb[0].mxu0
        %v1234 = vadd.f32 0.0, %v1233
        %v1235 = vpop.f32.mrb[0].mxu0
        %1236 = vmatprep.mubr.bf16.mxu0 %v1163
        %1237 = vmatmul.mubr.bf16.gmra.mrb[0].mxu0 %v1162
        %v1238 = vpop.f32.mrb[0].mxu0
        %v1239 = vadd.f32 0.0, %v1238
        %v1240 = vpop.f32.mrb[0].mxu0
        %v1241 = vpop.f32.mrb[0].mxu0
        %v1242 = vadd.f32 0.0, %v1241
        %v1243 = vpop.f32.mrb[0].mxu0
        %1244 = vdwg.mxu0
        %s1245 = sld [smem:[#allocation4]]
        %v1246 = vstv %s1245
        %v1247 = vmul.f32 %v1246, %v1215
        %v1248 = vmul.f32 %v1246, %v1218
        %v1249 = vmul.f32 %v1246, %v1223
        %v1250 = vmul.f32 %v1246, %v1226
        %v1251 = vmul.f32 %v1246, %v1231
        %v1252 = vmul.f32 %v1246, %v1234
        %v1253 = vmul.f32 %v1246, %v1239
        %v1254 = vmul.f32 %v1246, %v1242
        %v1255 = vadd.f32 %v1247, %v783
        %v1256 = vadd.f32 %v1248, %v784
        %v1257 = vadd.f32 %v1249, %v785
        %v1258 = vadd.f32 %v1250, %v786
        %v1259 = vadd.f32 %v1251, %v787
        %v1260 = vadd.f32 %v1252, %v788
        %v1261 = vadd.f32 %v1253, %v789
        %v1262 = vadd.f32 %v1254, %v790
        %1263 = vst [vmem:[%s409] sm:$0xff] %v1255
        %1264 = vst [vmem:[%s409 + $0x8] sm:$0xff] %v1256
        %1265 = vst [vmem:[%s409 + $0x10] sm:$0xff] %v1257
        %1266 = vst [vmem:[%s409 + $0x18] sm:$0xff] %v1258
        %1267 = vst [vmem:[%s409 + $0x20] sm:$0xff] %v1259
        %1268 = vst [vmem:[%s409 + $0x28] sm:$0xff] %v1260
        %1269 = vst [vmem:[%s409 + $0x30] sm:$0xff] %v1261
        %1270 = vst [vmem:[%s409 + $0x38] sm:$0xff] %v1262
        %s1271 = sand.u32 %s211, 1
        %s1272 = scalar_lea.sflag [#allocation7], %s1271
        %s1273 = sand.u32 %s211, 1
        %s1274 = smul.addr %s1273, 64
        %s1275 = scalar_lea.vmem [#allocation16], %s1274
        // Predicated region
        $region84: #{tpu_custom_call.1} parent=47 // pred_check
          %p1276 = pneg %p221
        $region85: #{tpu_custom_call.1} parent=47 // pred_check_branch
          %1278 = sbr.rel (%p1276) target = $region87
        $region86: #{tpu_custom_call.1} parent=47 // pred_region
          %s1279 = smul.u32 8, %s35
          %s1281 = ssub.s32 1024, 1024
          %1282 = vsyncadd %s1272, %s1281
          %s1283 = smul.addr %s34, 32
          %s1284 = sadd.s32 %s1279, %s1283
          %s1285 = smul.addr %s1284, 128
          %s1286 = scalar_lea.hbm %s7, %s1285
          %s1287 = sshll.u32 %s1275, 4
          %s1288 = int_to_ptr.vmem [resolvable:$true] %s1287
          %1293 = dma.vmem_to_hbm [thread:$0]  %s1288, 1024, %s1286, %s1272, 128, 128, 8
        $region87: #{tpu_custom_call.1} parent=47 // pred_fallthru
          _
      $region48: #{tpu_custom_call.1} parent=5 // pred_fallthru
        _
      %p1294 = scmp.le.s32.totalorder 2, %s25
      // Predicated region
      $region88: #{tpu_custom_call.1} parent=5 // pred_check
        %p1295 = pneg %p1294
      $region89: #{tpu_custom_call.1} parent=5 // pred_check_branch
        %1297 = sbr.rel (%p1295) target = $region91
      $region90: #{tpu_custom_call.1} parent=5 // pred_region
        %s1298 = ssub.s32 %s25, 2
        // Predicated region
        $region92: #{tpu_custom_call.1} parent=90 // pred_check
          %p1299 = pneg %p227
        $region93: #{tpu_custom_call.1} parent=90 // pred_check_branch
          %1301 = sbr.rel (%p1299) target = $region95
        $region94: #{tpu_custom_call.1} parent=90 // pred_region
          %s1302 = sand.u32 %s212, 1
          %s1303 = scalar_lea.sflag [#allocation7], %s1302
          %s1304 = sand.u32 %s212, 1
          %s1305 = smul.addr %s1304, 64
          %s1306 = scalar_lea.vmem [#allocation16], %s1305
          %1307 = dma.done %s1303, 1024
        $region95: #{tpu_custom_call.1} parent=90 // pred_fallthru
          _
      $region91: #{tpu_custom_call.1} parent=5 // pred_fallthru
        _
    $region6: #{tpu_custom_call.1} parent=1 // loop_footer
      %s29 = sadd.s32 1, %s25
    $region7: #{tpu_custom_call.1} parent=1 // loop_footer_branch
      %24 = sbr.rel target = $region3
    $region8: #{tpu_custom_call.1} parent=1 // loop_exit
      _
    %1308 = vsyncpa [#allocation6], 1
    %s1309 = scalar_lea.sflag [#allocation6], 1
    %1310 = vsyncpa %s1309, 1
    %1311 = vsyncpa [#allocation9], 1
    %s1312 = scalar_lea.sflag [#allocation9], 1
    %1313 = vsyncpa %s1312, 1
    %1314 = vsyncpa [#allocation12], 1
    %1315 = vsyncpa [#allocation15], 1
    %1316 = vsyncpa [#allocation7], 1
    %s1317 = scalar_lea.sflag [#allocation7], 1
    %1318 = vsyncpa %s1317, 1

// kernel: tpu_custom_call.1
$region0: #{tpu_custom_call.1}
  #allocation0 [shape = 'u32[]', space=smem, size = 0x4, offset = 0x4, fixed_abs, tag = 'smem constant byte address 0x4 - core index']
  #allocation1 [shape = 'u32[144,128]{1,0:T(1,128)}', space=vmem, size = 0x12000, scoped, tag = 'internal scratch']
  #allocation2 [shape = 'bf16[256,128]{1,0:T(16,128)(2,1)}', space=vmem, size = 0x10000, scoped, tag = 'scratch operand']
  #allocation3 [shape = 'bf16[256,128]{1,0:T(16,128)(2,1)}', space=vmem, size = 0x10000, scoped, tag = 'scratch operand']
  #allocation4 [shape = 'f32[1,1]{1,0:T(1,128)S(6)}', space=smem, size = 0x200, scoped, tag = 'scoped memory for tpu_custom_call.1']
  %s0 = inlined_call_operand.hbm [shape: bf16[2,256,128], index: 0, kind: input, shape index: {}]
  %s1 = inlined_call_operand.hbm [shape: f32[2,256,128], index: 1, kind: input, shape index: {}]
  %s2 = inlined_call_operand.hbm [shape: bf16[128,256], index: 2, kind: input, shape index: {}]
  %s3 = inlined_call_operand.hbm [shape: f32[1,256], index: 3, kind: input, shape index: {}]
  %s4 = inlined_call_operand.hbm [shape: bf16[128,128], index: 4, kind: input, shape index: {}]
  %s5 = inlined_call_operand.hbm [shape: f32[1,128], index: 5, kind: input, shape index: {}]
  %s6 = inlined_call_operand.<no memory space> [shape: f32[1,1], index: 6, kind: input, shape index: {}]
  %s7 = inlined_call_operand.hbm [shape: f32[2,256,128], index: 7, kind: output, shape index: {}]
  %s8 = sld [smem:[#allocation0]]
  $region96: #{tpu_custom_call.1} parent=0
    _
  %s10 = ssub.s32 1, %s8
  %s11 = scalar_select 0, %s10, %s8
  %12 = sst [smem:[#allocation4]] %s6
  $region1: #{tpu_custom_call.1} parent=0
    #allocation5 [shape = 'u8[131072]{0}', space=vmem, size = 0x20000, scoped, tag = 'input window, operand 0']
    #allocation6 [shape = 's32[2]{0}', space=sflag, size = 0x8, scoped, tag = 'scoped memory for tpu_custom_call.1']
    #allocation7 [shape = 's32[2]{0}', space=sflag, size = 0x8, scoped, tag = 'scoped memory for tpu_custom_call.1']
    #allocation8 [shape = 'u8[65536]{0}', space=vmem, size = 0x10000, scoped, tag = 'input window, operand 1']
    #allocation9 [shape = 's32[2]{0}', space=sflag, size = 0x8, scoped, tag = 'scoped memory for tpu_custom_call.1']
    #allocation10 [shape = 'u8[65536]{0}', space=vmem, size = 0x10000, scoped, tag = 'input window, operand 2, single buffered']
    #allocation11 [shape = 'u8[1024]{0}', space=vmem, size = 0x400, scoped, tag = 'input window, operand 3, single buffered']
    #allocation12 [shape = 's32[1]{0}', space=sflag, size = 0x4, scoped, tag = 'scoped memory for tpu_custom_call.1']
    #allocation13 [shape = 'u8[32768]{0}', space=vmem, size = 0x8000, scoped, tag = 'input window, operand 4, single buffered']
    #allocation14 [shape = 'u8[512]{0}', space=vmem, size = 0x400, scoped, tag = 'input window, operand 5, single buffered']
    #allocation15 [shape = 's32[1]{0}', space=sflag, size = 0x4, scoped, tag = 'scoped memory for tpu_custom_call.1']
    #allocation16 [shape = 'u8[65536]{0}', space=vmem, size = 0x10000, scoped, tag = 'output window, operand 0']
    %13 = vsyncpa [#allocation6], 0
    %s14 = scalar_lea.sflag [#allocation6], 1
    %15 = vsyncpa %s14, 0
    %16 = vsyncpa [#allocation9], 0
    %s17 = scalar_lea.sflag [#allocation9], 1
    %18 = vsyncpa %s17, 0
    %19 = vsyncpa [#allocation12], 0
    %20 = vsyncpa [#allocation15], 0
    %21 = vsyncpa [#allocation7], 0
    %s22 = scalar_lea.sflag [#allocation7], 1
    %23 = vsyncpa %s22, 0
    loop: start=0, step=1, limit=10
    $region2: #{tpu_custom_call.1} parent=1 // loop_pre_header
      _
    $region3: #{tpu_custom_call.1} parent=1 // loop_header
      %s25 = sphi 0, %s29
      %p26 = scmp.ge.s32.totalorder %s25, 10
      %s32 = sphi 0, %s44
      %s33 = sphi 0, %s40
      %s34 = sphi 0, %s32
      %s35 = sphi 0, %s33
      %s36 = sphi 0, %s34
      %s37 = sphi 0, %s35
      %s47 = sphi 0, %s49
      %s50 = sphi 0, %s47
      %s51 = sphi 0, %s50
      %s67 = sphi 0, %s51
      %s75 = sphi 0, %s77
      %s78 = sphi 0, %s75
      %s79 = sphi 0, %s78
      %s95 = sphi 0, %s79
      %s99 = sphi 0, %s99
      %s101 = sphi 0, %s99
      %s102 = sphi 0, %s101
      %s116 = sphi 0, %s102
      %s120 = sphi 0, %s120
      %s122 = sphi 0, %s120
      %s123 = sphi 0, %s122
      %s137 = sphi 0, %s123
      %s141 = sphi 0, %s141
      %s143 = sphi 0, %s141
      %s144 = sphi 0, %s143
      %s158 = sphi 0, %s144
      %s162 = sphi 0, %s162
      %s164 = sphi 0, %s162
      %s165 = sphi 0, %s164
      %s179 = sphi 0, %s165
      %s183 = sphi 0, %s183
      %s185 = sphi 0, %s183
      %s186 = sphi 0, %s185
      %s200 = sphi 0, %s186
      %s208 = sphi 0, %s210
      %s211 = sphi 0, %s208
      %s212 = sphi 0, %s211
      %s228 = sphi 0, %s212
    $region4: #{tpu_custom_call.1} parent=1 // loop_header_branch
      %28 = sbr.rel (%p26) target = $region8
    $region5: #{tpu_custom_call.1} parent=1 // loop_body
      %s30 = ssub.s32 %s25, 1
      %s31 = ssub.s32 %s25, 2
      %s38 = sadd.s32 1, %s33
      %p39 = scmp.ge.s32.totalorder %s38, 4
      %s40 = scalar_select %p39, 0, %s38
      %s41 = sadd.s32 1, %s32
      %s42 = scalar_select %p39, %s41, %s32
      %p43 = scmp.ge.s32.totalorder %s42, 2
      %s44 = scalar_select %p43, 0, %s42
      %s45 = ssub.s32 %s32, %s44
      %p46 = scmp.eq.s32.totalorder %s45, 0
      %s48 = sadd.s32 %s47, 1
      %s49 = scalar_select %p46, %s47, %s48
      %p52 = pneg %p46
      %p53 = scmp.eq.s32.totalorder %s25, 7
      %p54 = por %p52, %p53
      %p55 = scmp.ne.s32.totalorder %s47, %s50
      %p56 = scmp.eq.s32.totalorder %s25, 0
      %p57 = por %p55, %p56
      %p58 = scmp.ne.s32.totalorder %s47, %s50
      %p59 = scmp.eq.s32.totalorder %s30, 7
      %p60 = por %p58, %p59
      %p61 = scmp.ne.s32.totalorder %s50, %s51
      %p62 = scmp.eq.s32.totalorder %s30, 0
      %p63 = por %p61, %p62
      %p64 = scmp.ne.s32.totalorder %s50, %s51
      %p65 = scmp.eq.s32.totalorder %s31, 7
      %p66 = por %p64, %p65
      %p68 = scmp.ne.s32.totalorder %s51, %s67
      %p69 = scmp.eq.s32.totalorder %s31, 0
      %p70 = por %p68, %p69
      %s71 = ssub.s32 %s32, %s44
      %s72 = ssub.s32 %s33, %s40
      %s73 = sor.u32 %s71, %s72
      %p74 = scmp.eq.s32.totalorder %s73, 0
      %s76 = sadd.s32 %s75, 1
      %s77 = scalar_select %p74, %s75, %s76
      %p80 = pneg %p74
      %p81 = scmp.eq.s32.totalorder %s25, 7
      %p82 = por %p80, %p81
      %p83 = scmp.ne.s32.totalorder %s75, %s78
      %p84 = scmp.eq.s32.totalorder %s25, 0
      %p85 = por %p83, %p84
      %p86 = scmp.ne.s32.totalorder %s75, %s78
      %p87 = scmp.eq.s32.totalorder %s30, 7
      %p88 = por %p86, %p87
      %p89 = scmp.ne.s32.totalorder %s78, %s79
      %p90 = scmp.eq.s32.totalorder %s30, 0
      %p91 = por %p89, %p90
      %p92 = scmp.ne.s32.totalorder %s78, %s79
      %p93 = scmp.eq.s32.totalorder %s31, 7
      %p94 = por %p92, %p93
      %p96 = scmp.ne.s32.totalorder %s79, %s95
      %p97 = scmp.eq.s32.totalorder %s31, 0
      %p98 = por %p96, %p97
      %s100 = sadd.s32 %s99, 1
      %p103 = scmp.eq.s32.totalorder %s25, 7
      %p104 = scmp.ne.s32.totalorder %s99, %s101
      %p105 = scmp.eq.s32.totalorder %s25, 0
      %p106 = por %p104, %p105
      %p107 = scmp.ne.s32.totalorder %s99, %s101
      %p108 = scmp.eq.s32.totalorder %s30, 7
      %p109 = por %p107, %p108
      %p110 = scmp.ne.s32.totalorder %s101, %s102
      %p111 = scmp.eq.s32.totalorder %s30, 0
      %p112 = por %p110, %p111
      %p113 = scmp.ne.s32.totalorder %s101, %s102
      %p114 = scmp.eq.s32.totalorder %s31, 7
      %p115 = por %p113, %p114
      %p117 = scmp.ne.s32.totalorder %s102, %s116
      %p118 = scmp.eq.s32.totalorder %s31, 0
      %p119 = por %p117, %p118
      %s121 = sadd.s32 %s120, 1
      %p124 = scmp.eq.s32.totalorder %s25, 7
      %p125 = scmp.ne.s32.totalorder %s120, %s122
      %p126 = scmp.eq.s32.totalorder %s25, 0
      %p127 = por %p125, %p126
      %p128 = scmp.ne.s32.totalorder %s120, %s122
      %p129 = scmp.eq.s32.totalorder %s30, 7
      %p130 = por %p128, %p129
      %p131 = scmp.ne.s32.totalorder %s122, %s123
      %p132 = scmp.eq.s32.totalorder %s30, 0
      %p133 = por %p131, %p132
      %p134 = scmp.ne.s32.totalorder %s122, %s123
      %p135 = scmp.eq.s32.totalorder %s31, 7
      %p136 = por %p134, %p135
      %p138 = scmp.ne.s32.totalorder %s123, %s137
      %p139 = scmp.eq.s32.totalorder %s31, 0
      %p140 = por %p138, %p139
      %s142 = sadd.s32 %s141, 1
      %p145 = scmp.eq.s32.totalorder %s25, 7
      %p146 = scmp.ne.s32.totalorder %s141, %s143
      %p147 = scmp.eq.s32.totalorder %s25, 0
      %p148 = por %p146, %p147
      %p149 = scmp.ne.s32.totalorder %s141, %s143
      %p150 = scmp.eq.s32.totalorder %s30, 7
      %p151 = por %p149, %p150
      %p152 = scmp.ne.s32.totalorder %s143, %s144
      %p153 = scmp.eq.s32.totalorder %s30, 0
      %p154 = por %p152, %p153
      %p155 = scmp.ne.s32.totalorder %s143, %s144
      %p156 = scmp.eq.s32.totalorder %s31, 7
      %p157 = por %p155, %p156
      %p159 = scmp.ne.s32.totalorder %s144, %s158
      %p160 = scmp.eq.s32.totalorder %s31, 0
      %p161 = por %p159, %p160
      %s163 = sadd.s32 %s162, 1
      %p166 = scmp.eq.s32.totalorder %s25, 7
      %p167 = scmp.ne.s32.totalorder %s162, %s164
      %p168 = scmp.eq.s32.totalorder %s25, 0
      %p169 = por %p167, %p168
      %p170 = scmp.ne.s32.totalorder %s162, %s164
      %p171 = scmp.eq.s32.totalorder %s30, 7
      %p172 = por %p170, %p171
      %p173 = scmp.ne.s32.totalorder %s164, %s165
      %p174 = scmp.eq.s32.totalorder %s30, 0
      %p175 = por %p173, %p174
      %p176 = scmp.ne.s32.totalorder %s164, %s165
      %p177 = scmp.eq.s32.totalorder %s31, 7
      %p178 = por %p176, %p177
      %p180 = scmp.ne.s32.totalorder %s165, %s179
      %p181 = scmp.eq.s32.totalorder %s31, 0
      %p182 = por %p180, %p181
      %s184 = sadd.s32 %s183, 1
      %p187 = scmp.eq.s32.totalorder %s25, 7
      %p188 = scmp.ne.s32.totalorder %s183, %s185
      %p189 = scmp.eq.s32.totalorder %s25, 0
      %p190 = por %p188, %p189
      %p191 = scmp.ne.s32.totalorder %s183, %s185
      %p192 = scmp.eq.s32.totalorder %s30, 7
      %p193 = por %p191, %p192
      %p194 = scmp.ne.s32.totalorder %s185, %s186
      %p195 = scmp.eq.s32.totalorder %s30, 0
      %p196 = por %p194, %p195
      %p197 = scmp.ne.s32.totalorder %s185, %s186
      %p198 = scmp.eq.s32.totalorder %s31, 7
      %p199 = por %p197, %p198
      %p201 = scmp.ne.s32.totalorder %s186, %s200
      %p202 = scmp.eq.s32.totalorder %s31, 0
      %p203 = por %p201, %p202
      %s204 = ssub.s32 %s32, %s44
      %s205 = ssub.s32 %s33, %s40
      %s206 = sor.u32 %s204, %s205
      %p207 = scmp.eq.s32.totalorder %s206, 0
      %s209 = sadd.s32 %s208, 1
      %s210 = scalar_select %p207, %s208, %s209
      %p213 = pneg %p207
      %p214 = scmp.eq.s32.totalorder %s25, 7
      %p215 = por %p213, %p214
      %p216 = scmp.ne.s32.totalorder %s208, %s211
      %p217 = scmp.eq.s32.totalorder %s25, 0
      %p218 = por %p216, %p217
      %p219 = scmp.ne.s32.totalorder %s208, %s211
      %p220 = scmp.eq.s32.totalorder %s30, 7
      %p221 = por %p219, %p220
      %p222 = scmp.ne.s32.totalorder %s211, %s212
      %p223 = scmp.eq.s32.totalorder %s30, 0
      %p224 = por %p222, %p223
      %p225 = scmp.ne.s32.totalorder %s211, %s212
      %p226 = scmp.eq.s32.totalorder %s31, 7
      %p227 = por %p225, %p226
      %p229 = scmp.ne.s32.totalorder %s212, %s228
      %p230 = scmp.eq.s32.totalorder %s31, 0
      %p231 = por %p229, %p230
      %p232 = scmp.le.s32.totalorder 1, %s25
      %p233 = scmp.lt.s32.totalorder %s25, 9
      %p234 = pnand %p232, %p233
      %p235 = pneg %p234
      // Predicated region
      $region9: #{tpu_custom_call.1} parent=5 // pred_check
        _
      $region10: #{tpu_custom_call.1} parent=5 // pred_check_branch
        %237 = sbr.rel (%p234) target = $region12
      $region11: #{tpu_custom_call.1} parent=5 // pred_region
        %s238 = ssub.s32 %s25, 1
        // Predicated region
        $region13: #{tpu_custom_call.1} parent=11 // pred_check
          %p239 = pneg %p112
        $region14: #{tpu_custom_call.1} parent=11 // pred_check_branch
          %241 = sbr.rel (%p239) target = $region16
        $region15: #{tpu_custom_call.1} parent=11 // pred_region
          %s243 = ssub.s32 2048, 2048
          %244 = vsyncadd [#allocation9], %s243
          %s245 = sshll.u32 [#allocation10], 4
          %s246 = int_to_ptr.vmem [resolvable:$true] %s245
          %251 = dma.hbm_to_vmem [thread:$0]  %s2, 2048, %s246, [#allocation9], 128, 128, 8
        $region16: #{tpu_custom_call.1} parent=11 // pred_fallthru
          _
        // Predicated region
        $region17: #{tpu_custom_call.1} parent=11 // pred_check
          %p252 = pneg %p133
        $region18: #{tpu_custom_call.1} parent=11 // pred_check_branch
          %254 = sbr.rel (%p252) target = $region20
        $region19: #{tpu_custom_call.1} parent=11 // pred_region
          %s256 = ssub.s32 32, 32
          %257 = vsyncadd [#allocation12], %s256
          %s259 = sshll.u32 [#allocation11], 4
          %s260 = int_to_ptr.vmem [resolvable:$true] %s259
          %262 = dma.hbm_to_vmem [thread:$0]  %s3, 32, %s260, [#allocation12]
        $region20: #{tpu_custom_call.1} parent=11 // pred_fallthru
          _
        // Predicated region
        $region21: #{tpu_custom_call.1} parent=11 // pred_check
          %p263 = pneg %p154
        $region22: #{tpu_custom_call.1} parent=11 // pred_check_branch
          %265 = sbr.rel (%p263) target = $region24
        $region23: #{tpu_custom_call.1} parent=11 // pred_region
          %s267 = ssub.s32 1024, 1024
          %268 = vsyncadd [#allocation12], %s267
          %s269 = sshll.u32 [#allocation13], 4
          %s270 = int_to_ptr.vmem [resolvable:$true] %s269
          %275 = dma.hbm_to_vmem [thread:$0]  %s4, 1024, %s270, [#allocation12], 64, 64, 4
        $region24: #{tpu_custom_call.1} parent=11 // pred_fallthru
          _
        // Predicated region
        $region25: #{tpu_custom_call.1} parent=11 // pred_check
          %p276 = pneg %p175
        $region26: #{tpu_custom_call.1} parent=11 // pred_check_branch
          %278 = sbr.rel (%p276) target = $region28
        $region27: #{tpu_custom_call.1} parent=11 // pred_region
          %s280 = ssub.s32 16, 16
          %281 = vsyncadd [#allocation15], %s280
          %s283 = sshll.u32 [#allocation14], 4
          %s284 = int_to_ptr.vmem [resolvable:$true] %s283
          %286 = dma.hbm_to_vmem [thread:$0]  %s5, 16, %s284, [#allocation15]
        $region28: #{tpu_custom_call.1} parent=11 // pred_fallthru
          _
        // Predicated region
        $region29: #{tpu_custom_call.1} parent=11 // pred_check
          %p287 = pneg %p196
        $region30: #{tpu_custom_call.1} parent=11 // pred_check_branch
          %289 = sbr.rel (%p287) target = $region32
        $region31: #{tpu_custom_call.1} parent=11 // pred_region
          _
        $region32: #{tpu_custom_call.1} parent=11 // pred_fallthru
          _
      $region12: #{tpu_custom_call.1} parent=5 // pred_fallthru
        _
      %p290 = scmp.lt.s32.totalorder %s25, 8
      // Predicated region
      $region33: #{tpu_custom_call.1} parent=5 // pred_check
        %p291 = pneg %p290
      $region34: #{tpu_custom_call.1} parent=5 // pred_check_branch
        %293 = sbr.rel (%p291) target = $region36
      $region35: #{tpu_custom_call.1} parent=5 // pred_region
        // Predicated region
        $region37: #{tpu_custom_call.1} parent=35 // pred_check
          %p294 = pneg %p57
        $region38: #{tpu_custom_call.1} parent=35 // pred_check_branch
          %296 = sbr.rel (%p294) target = $region40
        $region39: #{tpu_custom_call.1} parent=35 // pred_region
          %s297 = sand.u32 %s47, 1
          %s298 = scalar_lea.sflag [#allocation6], %s297
          %s299 = sand.u32 %s47, 1
          %s300 = smul.addr %s299, 128
          %s301 = scalar_lea.vmem [#allocation5], %s300
          %s303 = ssub.s32 2048, 2048
          %304 = vsyncadd %s298, %s303
          %s305 = smul.addr %s32, 32
          %s306 = smul.addr %s305, 64
          %s307 = scalar_lea.hbm %s0, %s306
          %s308 = sshll.u32 %s301, 4
          %s309 = int_to_ptr.vmem [resolvable:$true] %s308
          %314 = dma.hbm_to_vmem [thread:$0]  %s307, 2048, %s309, %s298, 64, 64, 4
        $region40: #{tpu_custom_call.1} parent=35 // pred_fallthru
          _
        // Predicated region
        $region41: #{tpu_custom_call.1} parent=35 // pred_check
          %p315 = pneg %p85
        $region42: #{tpu_custom_call.1} parent=35 // pred_check_branch
          %317 = sbr.rel (%p315) target = $region44
        $region43: #{tpu_custom_call.1} parent=35 // pred_region
          %s318 = sand.u32 %s25, 1
          %s319 = scalar_lea.sflag [#allocation9], %s318
          %s320 = sand.u32 %s75, 1
          %s321 = smul.addr %s320, 64
          %s322 = scalar_lea.vmem [#allocation8], %s321
          %s323 = smul.u32 8, %s33
          %s325 = ssub.s32 1024, 1024
          %326 = vsyncadd %s319, %s325
          %s327 = smul.addr %s32, 32
          %s328 = sadd.s32 %s323, %s327
          %s329 = smul.addr %s328, 128
          %s330 = scalar_lea.hbm %s1, %s329
          %s331 = sshll.u32 %s322, 4
          %s332 = int_to_ptr.vmem [resolvable:$true] %s331
          %337 = dma.hbm_to_vmem [thread:$0]  %s330, 1024, %s332, %s319, 128, 128, 8
        $region44: #{tpu_custom_call.1} parent=35 // pred_fallthru
          _
      $region36: #{tpu_custom_call.1} parent=5 // pred_fallthru
        _
      %p338 = scmp.le.s32.totalorder 1, %s25
      %p339 = scmp.lt.s32.totalorder %s25, 9
      %p340 = pnand %p338, %p339
      %p341 = pneg %p340
      // Predicated region
      $region45: #{tpu_custom_call.1} parent=5 // pred_check
        _
      $region46: #{tpu_custom_call.1} parent=5 // pred_check_branch
        %343 = sbr.rel (%p340) target = $region48
      $region47: #{tpu_custom_call.1} parent=5 // pred_region
        %s344 = ssub.s32 %s25, 1
        %s345 = sand.u32 %s50, 1
        %s346 = scalar_lea.sflag [#allocation6], %s345
        %s347 = sand.u32 %s50, 1
        %s348 = smul.addr %s347, 128
        %s349 = scalar_lea.vmem [#allocation5], %s348
        // Predicated region
        $region49: #{tpu_custom_call.1} parent=47 // pred_check
          %p350 = pneg %p63
        $region50: #{tpu_custom_call.1} parent=47 // pred_check_branch
          %352 = sbr.rel (%p350) target = $region52
        $region51: #{tpu_custom_call.1} parent=47 // pred_region
          %353 = dma.done %s346, 2048
        $region52: #{tpu_custom_call.1} parent=47 // pred_fallthru
          _
        %s354 = sand.u32 %s30, 1
        %s355 = scalar_lea.sflag [#allocation9], %s354
        %s356 = sand.u32 %s78, 1
        %s357 = smul.addr %s356, 64
        %s358 = scalar_lea.vmem [#allocation8], %s357
        // Predicated region
        $region53: #{tpu_custom_call.1} parent=47 // pred_check
          %p359 = pneg %p91
        $region54: #{tpu_custom_call.1} parent=47 // pred_check_branch
          %361 = sbr.rel (%p359) target = $region56
        $region55: #{tpu_custom_call.1} parent=47 // pred_region
          %362 = dma.done %s355, 1024
        $region56: #{tpu_custom_call.1} parent=47 // pred_fallthru
          _
        // Predicated region
        $region57: #{tpu_custom_call.1} parent=47 // pred_check
          %p363 = pneg %p112
        $region58: #{tpu_custom_call.1} parent=47 // pred_check_branch
          %365 = sbr.rel (%p363) target = $region60
        $region59: #{tpu_custom_call.1} parent=47 // pred_region
          %366 = dma.done [#allocation9], 2048
        $region60: #{tpu_custom_call.1} parent=47 // pred_fallthru
          _
        // Predicated region
        $region61: #{tpu_custom_call.1} parent=47 // pred_check
          %p367 = pneg %p133
        $region62: #{tpu_custom_call.1} parent=47 // pred_check_branch
          %369 = sbr.rel (%p367) target = $region64
        $region63: #{tpu_custom_call.1} parent=47 // pred_region
          %370 = dma.done [#allocation12], 32
        $region64: #{tpu_custom_call.1} parent=47 // pred_fallthru
          _
        // Predicated region
        $region65: #{tpu_custom_call.1} parent=47 // pred_check
          %p371 = pneg %p154
        $region66: #{tpu_custom_call.1} parent=47 // pred_check_branch
          %373 = sbr.rel (%p371) target = $region68
        $region67: #{tpu_custom_call.1} parent=47 // pred_region
          %374 = dma.done [#allocation12], 1024
        $region68: #{tpu_custom_call.1} parent=47 // pred_fallthru
          _
        // Predicated region
        $region69: #{tpu_custom_call.1} parent=47 // pred_check
          %p375 = pneg %p175
        $region70: #{tpu_custom_call.1} parent=47 // pred_check_branch
          %377 = sbr.rel (%p375) target = $region72
        $region71: #{tpu_custom_call.1} parent=47 // pred_region
          %378 = dma.done [#allocation15], 16
        $region72: #{tpu_custom_call.1} parent=47 // pred_fallthru
          _
        %s379 = sand.u32 %s50, 1
        %s380 = scalar_lea.sflag [#allocation6], %s379
        %s381 = sand.u32 %s50, 1
        %s382 = smul.addr %s381, 128
        %s383 = scalar_lea.vmem [#allocation5], %s382
        %p384 = pneg %p63
        %p385 = pneg %p60
        %s386 = sand.u32 %s30, 1
        %s387 = scalar_lea.sflag [#allocation9], %s386
        %s388 = sand.u32 %s78, 1
        %s389 = smul.addr %s388, 64
        %s390 = scalar_lea.vmem [#allocation8], %s389
        %p391 = pneg %p91
        %p392 = pneg %p88
        %p393 = pneg %p112
        %p394 = pneg %p109
        %p395 = pneg %p133
        %p396 = pneg %p130
        %p397 = pneg %p154
        %p398 = pneg %p151
        %p399 = pneg %p175
        %p400 = pneg %p172
        %p401 = pneg %p196
        %p402 = pneg %p193
        %p403 = pneg %p224
        %p404 = pneg %p221
        %s405 = sand.u32 %s211, 1
        %s406 = scalar_lea.sflag [#allocation7], %s405
        %s407 = sand.u32 %s211, 1
        %s408 = smul.addr %s407, 64
        %s409 = scalar_lea.vmem [#allocation16], %s408
        %s410 = smul.u32 8, %s35
        %s411 = smul.u32 8, %s35
        %p413 = scmp.eq.s32.totalorder %s35, 0
        // Predicated region
        $region73: #{tpu_custom_call.1} parent=47 // pred_check
          %p414 = pneg %p413
        $region74: #{tpu_custom_call.1} parent=47 // pred_check_branch
          %416 = sbr.rel (%p414) target = $region76
        $region75: #{tpu_custom_call.1} parent=47 // pred_region
          %v417 = vld [vmem:[#allocation10] sm:$0xff]
          %v418 = vld [vmem:[#allocation10 + $0x8] sm:$0xff]
          %v419 = vld [vmem:[#allocation10 + $0x10] sm:$0xff]
          %v420 = vld [vmem:[#allocation10 + $0x18] sm:$0xff]
          %v421 = vld [vmem:[#allocation10 + $0x20] sm:$0xff]
          %v422 = vld [vmem:[#allocation10 + $0x28] sm:$0xff]
          %v423 = vld [vmem:[#allocation10 + $0x30] sm:$0xff]
          %v424 = vld [vmem:[#allocation10 + $0x38] sm:$0xff]
          %v425 = vld [vmem:[#allocation10 + $0x40] sm:$0xff]
          %v426 = vld [vmem:[#allocation10 + $0x48] sm:$0xff]
          %v427 = vld [vmem:[#allocation10 + $0x50] sm:$0xff]
          %v428 = vld [vmem:[#allocation10 + $0x58] sm:$0xff]
          %v429 = vld [vmem:[#allocation10 + $0x60] sm:$0xff]
          %v430 = vld [vmem:[#allocation10 + $0x68] sm:$0xff]
          %v431 = vld [vmem:[#allocation10 + $0x70] sm:$0xff]
          %v432 = vld [vmem:[#allocation10 + $0x78] sm:$0xff]
          %v433 = vld [vmem:[#allocation11] sm:$0x3]
          loop: start=0, step=1, limit=2
          $region77: #{tpu_custom_call.1} parent=75 // loop_pre_header
            _
          $region78: #{tpu_custom_call.1} parent=75 // loop_header
            %s435 = sphi 0, %s439
            %p436 = scmp.ge.s32.totalorder %s435, 2
          $region79: #{tpu_custom_call.1} parent=75 // loop_header_branch
            %438 = sbr.rel (%p436) target = $region83
          $region80: #{tpu_custom_call.1} parent=75 // loop_body
            %s440 = smul.u32 %s435, 128
            %s441 = sshra.s32 %s440, 3
            %s442 = sand.u32 %s440, 7
            %s443 = smul.addr %s441, 4
            %s444 = scalar_lea.vmem %s349, %s443 [#allocation5]
            %v445 = vld [vmem:[%s444] sm:$0xf]
            %v446 = vld [vmem:[%s444 + $0x4] sm:$0xf]
            %v447 = vld [vmem:[%s444 + $0x8] sm:$0xf]
            %v448 = vld [vmem:[%s444 + $0xc] sm:$0xf]
            %v449 = vld [vmem:[%s444 + $0x10] sm:$0xf]
            %v450 = vld [vmem:[%s444 + $0x14] sm:$0xf]
            %v451 = vld [vmem:[%s444 + $0x18] sm:$0xf]
            %v452 = vld [vmem:[%s444 + $0x1c] sm:$0xf]
            %v453 = vld [vmem:[%s444 + $0x20] sm:$0xf]
            %v454 = vld [vmem:[%s444 + $0x24] sm:$0xf]
            %v455 = vld [vmem:[%s444 + $0x28] sm:$0xf]
            %v456 = vld [vmem:[%s444 + $0x2c] sm:$0xf]
            %v457 = vld [vmem:[%s444 + $0x30] sm:$0xf]
            %v458 = vld [vmem:[%s444 + $0x34] sm:$0xf]
            %v459 = vld [vmem:[%s444 + $0x38] sm:$0xf]
            %v460 = vld [vmem:[%s444 + $0x3c] sm:$0xf]
            %v462 = vlaneseq
            %v463 = vshrl.u32 %v462, 7
            %v464 = vsub.s32 0, %v463
            %v465 = vrot.slane %v433, %v464
            %v466 = vlaneseq
            %v467 = vshrl.u32 %v466, 7
            %v468 = vsub.s32 1, %v467
            %v469 = vrot.slane %v433, %v468
            %v488 = vunpack.c.l.b16 %v445
            %v489 = vunpack.c.l.b16 %v446
            %v490 = vunpack.c.l.b16 %v447
            %v491 = vunpack.c.l.b16 %v448
            %v492 = vunpack.c.l.b16 %v449
            %v493 = vunpack.c.l.b16 %v450
            %v494 = vunpack.c.l.b16 %v451
            %v495 = vunpack.c.l.b16 %v452
            %v496 = vunpack.c.l.b16 %v453
            %v497 = vunpack.c.l.b16 %v454
            %v498 = vunpack.c.l.b16 %v455
            %v499 = vunpack.c.l.b16 %v456
            %v500 = vunpack.c.l.b16 %v457
            %v501 = vunpack.c.l.b16 %v458
            %v502 = vunpack.c.l.b16 %v459
            %v503 = vunpack.c.l.b16 %v460
            %v504 = vpack.c.b16 %v489, %v488
            %v505 = vpack.c.b16 %v491, %v490
            %v506 = vpack.c.b16 %v493, %v492
            %v507 = vpack.c.b16 %v495, %v494
            %v508 = vpack.c.b16 %v497, %v496
            %v509 = vpack.c.b16 %v499, %v498
            %v510 = vpack.c.b16 %v501, %v500
            %v511 = vpack.c.b16 %v503, %v502
            %v536 = vunpack.c.l.b16 %v417
            %v537 = vunpack.c.h.b16 %v417
            %v538 = vunpack.c.l.b16 %v418
            %v539 = vunpack.c.h.b16 %v418
            %v540 = vunpack.c.l.b16 %v419
            %v541 = vunpack.c.h.b16 %v419
            %v542 = vunpack.c.l.b16 %v420
            %v543 = vunpack.c.h.b16 %v420
            %v544 = vunpack.c.l.b16 %v421
            %v545 = vunpack.c.h.b16 %v421
            %v546 = vunpack.c.l.b16 %v422
            %v547 = vunpack.c.h.b16 %v422
            %v548 = vunpack.c.l.b16 %v423
            %v549 = vunpack.c.h.b16 %v423
            %v550 = vunpack.c.l.b16 %v424
            %v551 = vunpack.c.h.b16 %v424
            %v552 = vunpack.c.l.b16 %v425
            %v553 = vunpack.c.h.b16 %v425
            %v554 = vunpack.c.l.b16 %v426
            %v555 = vunpack.c.h.b16 %v426
            %v556 = vunpack.c.l.b16 %v427
            %v557 = vunpack.c.h.b16 %v427
            %v558 = vunpack.c.l.b16 %v428
            %v559 = vunpack.c.h.b16 %v428
            %v560 = vunpack.c.l.b16 %v429
            %v561 = vunpack.c.h.b16 %v429
            %v562 = vunpack.c.l.b16 %v430
            %v563 = vunpack.c.h.b16 %v430
            %v564 = vunpack.c.l.b16 %v431
            %v565 = vunpack.c.h.b16 %v431
            %v566 = vunpack.c.l.b16 %v432
            %v567 = vunpack.c.h.b16 %v432
            %v568 = vpack.c.b16 %v538, %v536
            %v569 = vpack.c.b16 %v539, %v537
            %v570 = vpack.c.b16 %v542, %v540
            %v571 = vpack.c.b16 %v543, %v541
            %v572 = vpack.c.b16 %v546, %v544
            %v573 = vpack.c.b16 %v547, %v545
            %v574 = vpack.c.b16 %v550, %v548
            %v575 = vpack.c.b16 %v551, %v549
            %v576 = vpack.c.b16 %v554, %v552
            %v577 = vpack.c.b16 %v555, %v553
            %v578 = vpack.c.b16 %v558, %v556
            %v579 = vpack.c.b16 %v559, %v557
            %v580 = vpack.c.b16 %v562, %v560
            %v581 = vpack.c.b16 %v563, %v561
            %v582 = vpack.c.b16 %v566, %v564
            %v583 = vpack.c.b16 %v567, %v565
            %600 = vmatprep.subr.bf16.mxu0 %v569
            %601 = vmatpush1.bf16.msra.mxu0 %v568
            %602 = vmatprep.subr.bf16.mxu0 %v571
            %603 = vmatpush1.bf16.msra.mxu0 %v570
            %604 = vmatprep.subr.bf16.mxu0 %v573
            %605 = vmatpush1.bf16.msra.mxu0 %v572
            %606 = vmatprep.subr.bf16.mxu0 %v575
            %607 = vmatpush1.bf16.msra.mxu0 %v574
            %608 = vmatprep.subr.bf16.mxu0 %v577
            %609 = vmatpush1.bf16.msra.mxu0 %v576
            %610 = vmatprep.subr.bf16.mxu0 %v579
            %611 = vmatpush1.bf16.msra.mxu0 %v578
            %612 = vmatprep.subr.bf16.mxu0 %v581
            %613 = vmatpush1.bf16.msra.mxu0 %v580
            %614 = vmatprep.subr.bf16.mxu0 %v583
            %615 = vmatpush1.bf16.msra.mxu0 %v582
            %616 = vmatprep.subr.bf16.mxu0 0
            %617 = vmatpush1.bf16.msra.mxu0 0
            %618 = vmatprep.subr.bf16.mxu0 0
            %619 = vmatpush1.bf16.msra.mxu0 0
            %620 = vmatprep.subr.bf16.mxu0 0
            %621 = vmatpush1.bf16.msra.mxu0 0
            %622 = vmatprep.subr.bf16.mxu0 0
            %623 = vmatpush1.bf16.msra.mxu0 0
            %624 = vmatprep.subr.bf16.mxu0 0
            %625 = vmatpush1.bf16.msra.mxu0 0
            %626 = vmatprep.subr.bf16.mxu0 0
            %627 = vmatpush1.bf16.msra.mxu0 0
            %628 = vmatprep.subr.bf16.mxu0 0
            %629 = vmatpush1.bf16.msra.mxu0 0
            %630 = vmatprep.subr.bf16.mxu0 0
            %631 = vmatpush1.bf16.msra.mxu0 0
            %632 = vmatprep.mubr.bf16.mxu0 0
            %633 = vmatmul.mubr.bf16.gmra.mrb[0].mxu0 %v504
            %v634 = vpop.f32.mrb[0].mxu0
            %v635 = vadd.f32 %v465, %v634
            %v636 = vpop.f32.mrb[0].mxu0
            %v637 = vadd.f32 %v469, %v636
            %v638 = vpop.f32.mrb[0].mxu0
            %v639 = vadd.f32 %v465, %v638
            %v640 = vpop.f32.mrb[0].mxu0
            %v641 = vadd.f32 %v469, %v640
            %642 = vmatprep.mubr.bf16.mxu0 0
            %643 = vmatmul.mubr.bf16.gmra.mrb[0].mxu0 %v505
            %v644 = vpop.f32.mrb[0].mxu0
            %v645 = vadd.f32 %v465, %v644
            %v646 = vpop.f32.mrb[0].mxu0
            %v647 = vadd.f32 %v469, %v646
            %v648 = vpop.f32.mrb[0].mxu0
            %v649 = vadd.f32 %v465, %v648
            %v650 = vpop.f32.mrb[0].mxu0
            %v651 = vadd.f32 %v469, %v650
            %652 = vmatprep.mubr.bf16.mxu0 0
            %653 = vmatmul.mubr.bf16.gmra.mrb[0].mxu0 %v506
            %v654 = vpop.f32.mrb[0].mxu0
            %v655 = vadd.f32 %v465, %v654
            %v656 = vpop.f32.mrb[0].mxu0
            %v657 = vadd.f32 %v469, %v656
            %v658 = vpop.f32.mrb[0].mxu0
            %v659 = vadd.f32 %v465, %v658
            %v660 = vpop.f32.mrb[0].mxu0
            %v661 = vadd.f32 %v469, %v660
            %662 = vmatprep.mubr.bf16.mxu0 0
            %663 = vmatmul.mubr.bf16.gmra.mrb[0].mxu0 %v507
            %v664 = vpop.f32.mrb[0].mxu0
            %v665 = vadd.f32 %v465, %v664
            %v666 = vpop.f32.mrb[0].mxu0
            %v667 = vadd.f32 %v469, %v666
            %v668 = vpop.f32.mrb[0].mxu0
            %v669 = vadd.f32 %v465, %v668
            %v670 = vpop.f32.mrb[0].mxu0
            %v671 = vadd.f32 %v469, %v670
            %672 = vmatprep.mubr.bf16.mxu0 0
            %673 = vmatmul.mubr.bf16.gmra.mrb[0].mxu0 %v508
            %v674 = vpop.f32.mrb[0].mxu0
            %v675 = vadd.f32 %v465, %v674
            %v676 = vpop.f32.mrb[0].mxu0
            %v677 = vadd.f32 %v469, %v676
            %v678 = vpop.f32.mrb[0].mxu0
            %v679 = vadd.f32 %v465, %v678
            %v680 = vpop.f32.mrb[0].mxu0
            %v681 = vadd.f32 %v469, %v680
            %682 = vmatprep.mubr.bf16.mxu0 0
            %683 = vmatmul.mubr.bf16.gmra.mrb[0].mxu0 %v509
            %v684 = vpop.f32.mrb[0].mxu0
            %v685 = vadd.f32 %v465, %v684
            %v686 = vpop.f32.mrb[0].mxu0
            %v687 = vadd.f32 %v469, %v686
            %v688 = vpop.f32.mrb[0].mxu0
            %v689 = vadd.f32 %v465, %v688
            %v690 = vpop.f32.mrb[0].mxu0
            %v691 = vadd.f32 %v469, %v690
            %692 = vmatprep.mubr.bf16.mxu0 0
            %693 = vmatmul.mubr.bf16.gmra.mrb[0].mxu0 %v510
            %v694 = vpop.f32.mrb[0].mxu0
            %v695 = vadd.f32 %v465, %v694
            %v696 = vpop.f32.mrb[0].mxu0
            %v697 = vadd.f32 %v469, %v696
            %v698 = vpop.f32.mrb[0].mxu0
            %v699 = vadd.f32 %v465, %v698
            %v700 = vpop.f32.mrb[0].mxu0
            %v701 = vadd.f32 %v469, %v700
            %702 = vmatprep.mubr.bf16.mxu0 0
            %703 = vmatmul.mubr.bf16.gmra.mrb[0].mxu0 %v511
            %v704 = vpop.f32.mrb[0].mxu0
            %v705 = vadd.f32 %v465, %v704
            %v706 = vpop.f32.mrb[0].mxu0
            %v707 = vadd.f32 %v469, %v706
            %v708 = vpop.f32.mrb[0].mxu0
            %v709 = vadd.f32 %v465, %v708
            %v710 = vpop.f32.mrb[0].mxu0
            %v711 = vadd.f32 %v469, %v710
            %712 = vdwg.mxu0
            %v713 = vmax.f32 %v635, 0.0
            %v714 = vmax.f32 %v637, 0.0
            %v715 = vmax.f32 %v639, 0.0
            %v716 = vmax.f32 %v641, 0.0
            %v717 = vmax.f32 %v645, 0.0
            %v718 = vmax.f32 %v647, 0.0
            %v719 = vmax.f32 %v649, 0.0
            %v720 = vmax.f32 %v651, 0.0
            %v721 = vmax.f32 %v655, 0.0
            %v722 = vmax.f32 %v657, 0.0
            %v723 = vmax.f32 %v659, 0.0
            %v724 = vmax.f32 %v661, 0.0
            %v725 = vmax.f32 %v665, 0.0
            %v726 = vmax.f32 %v667, 0.0
            %v727 = vmax.f32 %v669, 0.0
            %v728 = vmax.f32 %v671, 0.0
            %v729 = vmax.f32 %v675, 0.0
            %v730 = vmax.f32 %v677, 0.0
            %v731 = vmax.f32 %v679, 0.0
            %v732 = vmax.f32 %v681, 0.0
            %v733 = vmax.f32 %v685, 0.0
            %v734 = vmax.f32 %v687, 0.0
            %v735 = vmax.f32 %v689, 0.0
            %v736 = vmax.f32 %v691, 0.0
            %v737 = vmax.f32 %v695, 0.0
            %v738 = vmax.f32 %v697, 0.0
            %v739 = vmax.f32 %v699, 0.0
            %v740 = vmax.f32 %v701, 0.0
            %v741 = vmax.f32 %v705, 0.0
            %v742 = vmax.f32 %v707, 0.0
            %v743 = vmax.f32 %v709, 0.0
            %v744 = vmax.f32 %v711, 0.0
            %v745 = vpack.c.bf16 %v715, %v713
            %v746 = vpack.c.bf16 %v716, %v714
            %v747 = vpack.c.bf16 %v719, %v717
            %v748 = vpack.c.bf16 %v720, %v718
            %v749 = vpack.c.bf16 %v723, %v721
            %v750 = vpack.c.bf16 %v724, %v722
            %v751 = vpack.c.bf16 %v727, %v725
            %v752 = vpack.c.bf16 %v728, %v726
            %v753 = vpack.c.bf16 %v731, %v729
            %v754 = vpack.c.bf16 %v732, %v730
            %v755 = vpack.c.bf16 %v735, %v733
            %v756 = vpack.c.bf16 %v736, %v734
            %v757 = vpack.c.bf16 %v739, %v737
            %v758 = vpack.c.bf16 %v740, %v738
            %v759 = vpack.c.bf16 %v743, %v741
            %v760 = vpack.c.bf16 %v744, %v742
            %s761 = sshra.s32 %s440, 4
            %s762 = sand.u32 %s440, 15
            %s763 = smul.addr %s761, 8
            %s764 = scalar_lea.vmem [#allocation2], %s763
            %765 = vst [vmem:[%s764] sm:$0xff] %v745
            %766 = vst [vmem:[%s764 + $0x8] sm:$0xff] %v747
            %767 = vst [vmem:[%s764 + $0x10] sm:$0xff] %v749
            %768 = vst [vmem:[%s764 + $0x18] sm:$0xff] %v751
            %769 = vst [vmem:[%s764 + $0x20] sm:$0xff] %v753
            %770 = vst [vmem:[%s764 + $0x28] sm:$0xff] %v755
            %771 = vst [vmem:[%s764 + $0x30] sm:$0xff] %v757
            %772 = vst [vmem:[%s764 + $0x38] sm:$0xff] %v759
            %s773 = smul.addr %s761, 8
            %s774 = scalar_lea.vmem [#allocation3], %s773
            %775 = vst [vmem:[%s774] sm:$0xff] %v746
            %776 = vst [vmem:[%s774 + $0x8] sm:$0xff] %v748
            %777 = vst [vmem:[%s774 + $0x10] sm:$0xff] %v750
            %778 = vst [vmem:[%s774 + $0x18] sm:$0xff] %v752
            %779 = vst [vmem:[%s774 + $0x20] sm:$0xff] %v754
            %780 = vst [vmem:[%s774 + $0x28] sm:$0xff] %v756
            %781 = vst [vmem:[%s774 + $0x30] sm:$0xff] %v758
            %782 = vst [vmem:[%s774 + $0x38] sm:$0xff] %v760
          $region81: #{tpu_custom_call.1} parent=75 // loop_footer
            %s439 = sadd.s32 1, %s435
          $region82: #{tpu_custom_call.1} parent=75 // loop_footer_branch
            %434 = sbr.rel target = $region78
          $region83: #{tpu_custom_call.1} parent=75 // loop_exit
            _
        $region76: #{tpu_custom_call.1} parent=47 // pred_fallthru
          _
        %v783 = vld [vmem:[%s358] sm:$0xff]
        %v784 = vld [vmem:[%s358 + $0x8] sm:$0xff]
        %v785 = vld [vmem:[%s358 + $0x10] sm:$0xff]
        %v786 = vld [vmem:[%s358 + $0x18] sm:$0xff]
        %v787 = vld [vmem:[%s358 + $0x20] sm:$0xff]
        %v788 = vld [vmem:[%s358 + $0x28] sm:$0xff]
        %v789 = vld [vmem:[%s358 + $0x30] sm:$0xff]
        %v790 = vld [vmem:[%s358 + $0x38] sm:$0xff]
        %v791 = vpack.c.bf16 %v784, %v783
        %v792 = vpack.c.bf16 %v786, %v785
        %v793 = vpack.c.bf16 %v788, %v787
        %v794 = vpack.c.bf16 %v790, %v789
        %v795 = vld [vmem:[#allocation13] sm:$0xf]
        %v796 = vld [vmem:[#allocation13 + $0x4] sm:$0xf]
        %v797 = vld [vmem:[#allocation13 + $0x8] sm:$0xf]
        %v798 = vld [vmem:[#allocation13 + $0xc] sm:$0xf]
        %v799 = vld [vmem:[#allocation13 + $0x10] sm:$0xf]
        %v800 = vld [vmem:[#allocation13 + $0x14] sm:$0xf]
        %v801 = vld [vmem:[#allocation13 + $0x18] sm:$0xf]
        %v802 = vld [vmem:[#allocation13 + $0x1c] sm:$0xf]
        %v803 = vld [vmem:[#allocation13 + $0x20] sm:$0xf]
        %v804 = vld [vmem:[#allocation13 + $0x24] sm:$0xf]
        %v805 = vld [vmem:[#allocation13 + $0x28] sm:$0xf]
        %v806 = vld [vmem:[#allocation13 + $0x2c] sm:$0xf]
        %v807 = vld [vmem:[#allocation13 + $0x30] sm:$0xf]
        %v808 = vld [vmem:[#allocation13 + $0x34] sm:$0xf]
        %v809 = vld [vmem:[#allocation13 + $0x38] sm:$0xf]
        %v810 = vld [vmem:[#allocation13 + $0x3c] sm:$0xf]
        %v811 = vld [vmem:[#allocation14] sm:$0x1]
        %v813 = vlaneseq
        %v814 = vshrl.u32 %v813, 7
        %v815 = vsub.s32 0, %v814
        %v816 = vrot.slane %v811, %v815
        %v834 = vunpack.c.l.b16 %v795
        %v835 = vunpack.c.l.b16 %v796
        %v836 = vunpack.c.l.b16 %v797
        %v837 = vunpack.c.l.b16 %v798
        %v838 = vunpack.c.l.b16 %v799
        %v839 = vunpack.c.l.b16 %v800
        %v840 = vunpack.c.l.b16 %v801
        %v841 = vunpack.c.l.b16 %v802
        %v842 = vunpack.c.l.b16 %v803
        %v843 = vunpack.c.l.b16 %v804
        %v844 = vunpack.c.l.b16 %v805
        %v845 = vunpack.c.l.b16 %v806
        %v846 = vunpack.c.l.b16 %v807
        %v847 = vunpack.c.l.b16 %v808
        %v848 = vunpack.c.l.b16 %v809
        %v849 = vunpack.c.l.b16 %v810
        %v850 = vpack.c.b16 %v835, %v834
        %v851 = vpack.c.b16 %v837, %v836
        %v852 = vpack.c.b16 %v839, %v838
        %v853 = vpack.c.b16 %v841, %v840
        %v854 = vpack.c.b16 %v843, %v842
        %v855 = vpack.c.b16 %v845, %v844
        %v856 = vpack.c.b16 %v847, %v846
        %v857 = vpack.c.b16 %v849, %v848
        %866 = vmatprep.subr.bf16.mxu0 0
        %867 = vmatpush1.bf16.msra.mxu0 %v850
        %868 = vmatprep.subr.bf16.mxu0 0
        %869 = vmatpush1.bf16.msra.mxu0 %v851
        %870 = vmatprep.subr.bf16.mxu0 0
        %871 = vmatpush1.bf16.msra.mxu0 %v852
        %872 = vmatprep.subr.bf16.mxu0 0
        %873 = vmatpush1.bf16.msra.mxu0 %v853
        %874 = vmatprep.subr.bf16.mxu0 0
        %875 = vmatpush1.bf16.msra.mxu0 %v854
        %876 = vmatprep.subr.bf16.mxu0 0
        %877 = vmatpush1.bf16.msra.mxu0 %v855
        %878 = vmatprep.subr.bf16.mxu0 0
        %879 = vmatpush1.bf16.msra.mxu0 %v856
        %880 = vmatprep.subr.bf16.mxu0 0
        %881 = vmatpush1.bf16.msra.mxu0 %v857
        %882 = vmatprep.subr.bf16.mxu0 0
        %883 = vmatpush1.bf16.msra.mxu0 0
        %884 = vmatprep.subr.bf16.mxu0 0
        %885 = vmatpush1.bf16.msra.mxu0 0
        %886 = vmatprep.subr.bf16.mxu0 0
        %887 = vmatpush1.bf16.msra.mxu0 0
        %888 = vmatprep.subr.bf16.mxu0 0
        %889 = vmatpush1.bf16.msra.mxu0 0
        %890 = vmatprep.subr.bf16.mxu0 0
        %891 = vmatpush1.bf16.msra.mxu0 0
        %892 = vmatprep.subr.bf16.mxu0 0
        %893 = vmatpush1.bf16.msra.mxu0 0
        %894 = vmatprep.subr.bf16.mxu0 0
        %895 = vmatpush1.bf16.msra.mxu0 0
        %896 = vmatprep.subr.bf16.mxu0 0
        %897 = vmatpush1.bf16.msra.mxu0 0
        %898 = vmatprep.mubr.bf16.mxu0 0
        %899 = vmatmul.mubr.bf16.gmra.mrb[0].mxu0 %v791
        %v900 = vpop.f32.mrb[0].mxu0
        %v901 = vadd.f32 %v816, %v900
        %v902 = vpop.f32.mrb[0].mxu0
        %v903 = vpop.f32.mrb[0].mxu0
        %v904 = vadd.f32 %v816, %v903
        %v905 = vpop.f32.mrb[0].mxu0
        %906 = vmatprep.mubr.bf16.mxu0 0
        %907 = vmatmul.mubr.bf16.gmra.mrb[0].mxu0 %v792
        %v908 = vpop.f32.mrb[0].mxu0
        %v909 = vadd.f32 %v816, %v908
        %v910 = vpop.f32.mrb[0].mxu0
        %v911 = vpop.f32.mrb[0].mxu0
        %v912 = vadd.f32 %v816, %v911
        %v913 = vpop.f32.mrb[0].mxu0
        %914 = vmatprep.mubr.bf16.mxu0 0
        %915 = vmatmul.mubr.bf16.gmra.mrb[0].mxu0 %v793
        %v916 = vpop.f32.mrb[0].mxu0
        %v917 = vadd.f32 %v816, %v916
        %v918 = vpop.f32.mrb[0].mxu0
        %v919 = vpop.f32.mrb[0].mxu0
        %v920 = vadd.f32 %v816, %v919
        %v921 = vpop.f32.mrb[0].mxu0
        %922 = vmatprep.mubr.bf16.mxu0 0
        %923 = vmatmul.mubr.bf16.gmra.mrb[0].mxu0 %v794
        %v924 = vpop.f32.mrb[0].mxu0
        %v925 = vadd.f32 %v816, %v924
        %v926 = vpop.f32.mrb[0].mxu0
        %v927 = vpop.f32.mrb[0].mxu0
        %v928 = vadd.f32 %v816, %v927
        %v929 = vpop.f32.mrb[0].mxu0
        %930 = vdwg.mxu0
        %v931 = vmax.f32 %v901, 0.0
        %v932 = vmax.f32 %v904, 0.0
        %v933 = vmax.f32 %v909, 0.0
        %v934 = vmax.f32 %v912, 0.0
        %v935 = vmax.f32 %v917, 0.0
        %v936 = vmax.f32 %v920, 0.0
        %v937 = vmax.f32 %v925, 0.0
        %v938 = vmax.f32 %v928, 0.0
        %v939 = vpack.c.bf16 %v932, %v931
        %v940 = vpack.c.bf16 %v934, %v933
        %v941 = vpack.c.bf16 %v936, %v935
        %v942 = vpack.c.bf16 %v938, %v937
        %v943 = vld [vmem:[#allocation2] sm:$0xff]
        %v944 = vld [vmem:[#allocation2 + $0x8] sm:$0xff]
        %v945 = vld [vmem:[#allocation2 + $0x10] sm:$0xff]
        %v946 = vld [vmem:[#allocation2 + $0x18] sm:$0xff]
        %v947 = vld [vmem:[#allocation2 + $0x20] sm:$0xff]
        %v948 = vld [vmem:[#allocation2 + $0x28] sm:$0xff]
        %v949 = vld [vmem:[#allocation2 + $0x30] sm:$0xff]
        %v950 = vld [vmem:[#allocation2 + $0x38] sm:$0xff]
        %v951 = vld [vmem:[#allocation2 + $0x40] sm:$0xff]
        %v952 = vld [vmem:[#allocation2 + $0x48] sm:$0xff]
        %v953 = vld [vmem:[#allocation2 + $0x50] sm:$0xff]
        %v954 = vld [vmem:[#allocation2 + $0x58] sm:$0xff]
        %v955 = vld [vmem:[#allocation2 + $0x60] sm:$0xff]
        %v956 = vld [vmem:[#allocation2 + $0x68] sm:$0xff]
        %v957 = vld [vmem:[#allocation2 + $0x70] sm:$0xff]
        %v958 = vld [vmem:[#allocation2 + $0x78] sm:$0xff]
        %959 = vmatprep.subr.bf16.mxu0 0
        %960 = vmatpush1.bf16.xpose.msra.mxu0 %v943
        %961 = vmatprep.subr.bf16.mxu0 0
        %962 = vmatpush1.bf16.xpose.msra.mxu0 %v944
        %963 = vmatprep.subr.bf16.mxu0 0
        %964 = vmatpush1.bf16.xpose.msra.mxu0 %v945
        %965 = vmatprep.subr.bf16.mxu0 0
        %966 = vmatpush1.bf16.xpose.msra.mxu0 %v946
        %967 = vmatprep.subr.bf16.mxu0 0
        %968 = vmatpush1.bf16.xpose.msra.mxu0 %v947
        %969 = vmatprep.subr.bf16.mxu0 0
        %970 = vmatpush1.bf16.xpose.msra.mxu0 %v948
        %971 = vmatprep.subr.bf16.mxu0 0
        %972 = vmatpush1.bf16.xpose.msra.mxu0 %v949
        %973 = vmatprep.subr.bf16.mxu0 0
        %974 = vmatpush1.bf16.xpose.msra.mxu0 %v950
        %975 = vmatprep.subr.bf16.mxu0 0
        %976 = vmatpush1.bf16.xpose.msra.mxu0 %v951
        %977 = vmatprep.subr.bf16.mxu0 0
        %978 = vmatpush1.bf16.xpose.msra.mxu0 %v952
        %979 = vmatprep.subr.bf16.mxu0 0
        %980 = vmatpush1.bf16.xpose.msra.mxu0 %v953
        %981 = vmatprep.subr.bf16.mxu0 0
        %982 = vmatpush1.bf16.xpose.msra.mxu0 %v954
        %983 = vmatprep.subr.bf16.mxu0 0
        %984 = vmatpush1.bf16.xpose.msra.mxu0 %v955
        %985 = vmatprep.subr.bf16.mxu0 0
        %986 = vmatpush1.bf16.xpose.msra.mxu0 %v956
        %987 = vmatprep.subr.bf16.mxu0 0
        %988 = vmatpush1.bf16.xpose.msra.mxu0 %v957
        %989 = vmatprep.subr.bf16.mxu0 0
        %990 = vmatpush1.bf16.xpose.msra.mxu0 %v958
        %991 = vmatprep.mubr.bf16.mxu0 0
        %992 = vmatmul.mubr.bf16.gmra.mrb[0].mxu0 %v939
        %v993 = vpop.f32.mrb[0].mxu0
        %v994 = vadd.f32 0.0, %v993
        %v995 = vpop.f32.mrb[0].mxu0
        %v996 = vadd.f32 0.0, %v995
        %v997 = vpop.f32.mrb[0].mxu0
        %v998 = vadd.f32 0.0, %v997
        %v999 = vpop.f32.mrb[0].mxu0
        %v1000 = vadd.f32 0.0, %v999
        %1001 = vmatprep.mubr.bf16.mxu0 0
        %1002 = vmatmul.mubr.bf16.gmra.mrb[0].mxu0 %v940
        %v1003 = vpop.f32.mrb[0].mxu0
        %v1004 = vadd.f32 0.0, %v1003
        %v1005 = vpop.f32.mrb[0].mxu0
        %v1006 = vadd.f32 0.0, %v1005
        %v1007 = vpop.f32.mrb[0].mxu0
        %v1008 = vadd.f32 0.0, %v1007
        %v1009 = vpop.f32.mrb[0].mxu0
        %v1010 = vadd.f32 0.0, %v1009
        %1011 = vmatprep.mubr.bf16.mxu0 0
        %1012 = vmatmul.mubr.bf16.gmra.mrb[0].mxu0 %v941
        %v1013 = vpop.f32.mrb[0].mxu0
        %v1014 = vadd.f32 0.0, %v1013
        %v1015 = vpop.f32.mrb[0].mxu0
        %v1016 = vadd.f32 0.0, %v1015
        %v1017 = vpop.f32.mrb[0].mxu0
        %v1018 = vadd.f32 0.0, %v1017
        %v1019 = vpop.f32.mrb[0].mxu0
        %v1020 = vadd.f32 0.0, %v1019
        %1021 = vmatprep.mubr.bf16.mxu0 0
        %1022 = vmatmul.mubr.bf16.gmra.mrb[0].mxu0 %v942
        %v1023 = vpop.f32.mrb[0].mxu0
        %v1024 = vadd.f32 0.0, %v1023
        %v1025 = vpop.f32.mrb[0].mxu0
        %v1026 = vadd.f32 0.0, %v1025
        %v1027 = vpop.f32.mrb[0].mxu0
        %v1028 = vadd.f32 0.0, %v1027
        %v1029 = vpop.f32.mrb[0].mxu0
        %v1030 = vadd.f32 0.0, %v1029
        %1031 = vdwg.mxu0
        %v1032 = vmax.f32 %v994, %v996
        %1033 = vmax.xlane.f32.xlu0 %v1032
        %v1034 = vpop.xlane.xlu0 %1033
        %v1035 = vmax.f32 %v998, %v1000
        %1036 = vmax.xlane.f32.xlu0 %v1035
        %v1037 = vpop.xlane.xlu0 %1036
        %v1038 = vmax.f32 %v1004, %v1006
        %1039 = vmax.xlane.f32.xlu0 %v1038
        %v1040 = vpop.xlane.xlu0 %1039
        %v1041 = vmax.f32 %v1008, %v1010
        %1042 = vmax.xlane.f32.xlu0 %v1041
        %v1043 = vpop.xlane.xlu0 %1042
        %v1044 = vmax.f32 %v1014, %v1016
        %1045 = vmax.xlane.f32.xlu0 %v1044
        %v1046 = vpop.xlane.xlu0 %1045
        %v1047 = vmax.f32 %v1018, %v1020
        %1048 = vmax.xlane.f32.xlu0 %v1047
        %v1049 = vpop.xlane.xlu0 %1048
        %v1050 = vmax.f32 %v1024, %v1026
        %1051 = vmax.xlane.f32.xlu0 %v1050
        %v1052 = vpop.xlane.xlu0 %1051
        %v1053 = vmax.f32 %v1028, %v1030
        %1054 = vmax.xlane.f32.xlu0 %v1053
        %v1055 = vpop.xlane.xlu0 %1054
        %v1056 = vsub.f32 %v994, %v1034
        %v1057 = vsub.f32 %v996, %v1034
        %v1058 = vsub.f32 %v998, %v1037
        %v1059 = vsub.f32 %v1000, %v1037
        %v1060 = vsub.f32 %v1004, %v1040
        %v1061 = vsub.f32 %v1006, %v1040
        %v1062 = vsub.f32 %v1008, %v1043
        %v1063 = vsub.f32 %v1010, %v1043
        %v1064 = vsub.f32 %v1014, %v1046
        %v1065 = vsub.f32 %v1016, %v1046
        %v1066 = vsub.f32 %v1018, %v1049
        %v1067 = vsub.f32 %v1020, %v1049
        %v1068 = vsub.f32 %v1024, %v1052
        %v1069 = vsub.f32 %v1026, %v1052
        %v1070 = vsub.f32 %v1028, %v1055
        %v1071 = vsub.f32 %v1030, %v1055
        %v1072 = vpack.c.bf16 %v1058, %v1056
        %v1073 = vpack.c.bf16 %v1059, %v1057
        %v1074 = vpack.c.bf16 %v1062, %v1060
        %v1075 = vpack.c.bf16 %v1063, %v1061
        %v1076 = vpack.c.bf16 %v1066, %v1064
        %v1077 = vpack.c.bf16 %v1067, %v1065
        %v1078 = vpack.c.bf16 %v1070, %v1068
        %v1079 = vpack.c.bf16 %v1071, %v1069
        %v1081 = vmul.bf16 %v1072, 1069105081
        %v1082 = vpow.bf16.pop %v1081
        %v1084 = vmul.bf16 %v1073, 1069105081
        %v1085 = vpow.bf16.pop %v1084
        %v1087 = vmul.bf16 %v1074, 1069105081
        %v1088 = vpow.bf16.pop %v1087
        %v1090 = vmul.bf16 %v1075, 1069105081
        %v1091 = vpow.bf16.pop %v1090
        %v1093 = vmul.bf16 %v1076, 1069105081
        %v1094 = vpow.bf16.pop %v1093
        %v1096 = vmul.bf16 %v1077, 1069105081
        %v1097 = vpow.bf16.pop %v1096
        %v1099 = vmul.bf16 %v1078, 1069105081
        %v1100 = vpow.bf16.pop %v1099
        %v1102 = vmul.bf16 %v1079, 1069105081
        %v1103 = vpow.bf16.pop %v1102
        %v1104 = vunpack.c.l.bf16 %v1082
        %v1105 = vunpack.c.l.bf16 %v1085
        %v1106 = vunpack.c.h.bf16 %v1082
        %v1107 = vunpack.c.h.bf16 %v1085
        %v1108 = vunpack.c.l.bf16 %v1088
        %v1109 = vunpack.c.l.bf16 %v1091
        %v1110 = vunpack.c.h.bf16 %v1088
        %v1111 = vunpack.c.h.bf16 %v1091
        %v1112 = vunpack.c.l.bf16 %v1094
        %v1113 = vunpack.c.l.bf16 %v1097
        %v1114 = vunpack.c.h.bf16 %v1094
        %v1115 = vunpack.c.h.bf16 %v1097
        %v1116 = vunpack.c.l.bf16 %v1100
        %v1117 = vunpack.c.l.bf16 %v1103
        %v1118 = vunpack.c.h.bf16 %v1100
        %v1119 = vunpack.c.h.bf16 %v1103
        %v1120 = vadd.f32 %v1104, %v1105
        %1121 = vadd.xlane.f32.xlu0 %v1120
        %v1122 = vpop.xlane.xlu0 %1121
        %v1123 = vadd.f32 %v1106, %v1107
        %1124 = vadd.xlane.f32.xlu0 %v1123
        %v1125 = vpop.xlane.xlu0 %1124
        %v1126 = vadd.f32 %v1108, %v1109
        %1127 = vadd.xlane.f32.xlu0 %v1126
        %v1128 = vpop.xlane.xlu0 %1127
        %v1129 = vadd.f32 %v1110, %v1111
        %1130 = vadd.xlane.f32.xlu0 %v1129
        %v1131 = vpop.xlane.xlu0 %1130
        %v1132 = vadd.f32 %v1112, %v1113
        %1133 = vadd.xlane.f32.xlu0 %v1132
        %v1134 = vpop.xlane.xlu0 %1133
        %v1135 = vadd.f32 %v1114, %v1115
        %1136 = vadd.xlane.f32.xlu0 %v1135
        %v1137 = vpop.xlane.xlu0 %1136
        %v1138 = vadd.f32 %v1116, %v1117
        %1139 = vadd.xlane.f32.xlu0 %v1138
        %v1140 = vpop.xlane.xlu0 %1139
        %v1141 = vadd.f32 %v1118, %v1119
        %1142 = vadd.xlane.f32.xlu0 %v1141
        %v1143 = vpop.xlane.xlu0 %1142
        %v1144 = vrcp.pop %v1122
        %v1145 = vrcp.pop %v1125
        %v1146 = vrcp.pop %v1128
        %v1147 = vrcp.pop %v1131
        %v1148 = vrcp.pop %v1134
        %v1149 = vrcp.pop %v1137
        %v1150 = vrcp.pop %v1140
        %v1151 = vrcp.pop %v1143
        %v1152 = vpack.c.bf16 %v1145, %v1144
        %v1153 = vpack.c.bf16 %v1147, %v1146
        %v1154 = vpack.c.bf16 %v1149, %v1148
        %v1155 = vpack.c.bf16 %v1151, %v1150
        %v1156 = vmul.bf16 %v1082, %v1152
        %v1157 = vmul.bf16 %v1085, %v1152
        %v1158 = vmul.bf16 %v1088, %v1153
        %v1159 = vmul.bf16 %v1091, %v1153
        %v1160 = vmul.bf16 %v1094, %v1154
        %v1161 = vmul.bf16 %v1097, %v1154
        %v1162 = vmul.bf16 %v1100, %v1155
        %v1163 = vmul.bf16 %v1103, %v1155
        %v1164 = vld [vmem:[#allocation3] sm:$0xff]
        %v1165 = vld [vmem:[#allocation3 + $0x8] sm:$0xff]
        %v1166 = vld [vmem:[#allocation3 + $0x10] sm:$0xff]
        %v1167 = vld [vmem:[#allocation3 + $0x18] sm:$0xff]
        %v1168 = vld [vmem:[#allocation3 + $0x20] sm:$0xff]
        %v1169 = vld [vmem:[#allocation3 + $0x28] sm:$0xff]
        %v1170 = vld [vmem:[#allocation3 + $0x30] sm:$0xff]
        %v1171 = vld [vmem:[#allocation3 + $0x38] sm:$0xff]
        %v1172 = vld [vmem:[#allocation3 + $0x40] sm:$0xff]
        %v1173 = vld [vmem:[#allocation3 + $0x48] sm:$0xff]
        %v1174 = vld [vmem:[#allocation3 + $0x50] sm:$0xff]
        %v1175 = vld [vmem:[#allocation3 + $0x58] sm:$0xff]
        %v1176 = vld [vmem:[#allocation3 + $0x60] sm:$0xff]
        %v1177 = vld [vmem:[#allocation3 + $0x68] sm:$0xff]
        %v1178 = vld [vmem:[#allocation3 + $0x70] sm:$0xff]
        %v1179 = vld [vmem:[#allocation3 + $0x78] sm:$0xff]
        %1180 = vmatprep.subr.bf16.mxu0 0
        %1181 = vmatpush1.bf16.msra.mxu0 %v1164
        %1182 = vmatprep.subr.bf16.mxu0 0
        %1183 = vmatpush1.bf16.msra.mxu0 %v1165
        %1184 = vmatprep.subr.bf16.mxu0 0
        %1185 = vmatpush1.bf16.msra.mxu0 %v1166
        %1186 = vmatprep.subr.bf16.mxu0 0
        %1187 = vmatpush1.bf16.msra.mxu0 %v1167
        %1188 = vmatprep.subr.bf16.mxu0 0
        %1189 = vmatpush1.bf16.msra.mxu0 %v1168
        %1190 = vmatprep.subr.bf16.mxu0 0
        %1191 = vmatpush1.bf16.msra.mxu0 %v1169
        %1192 = vmatprep.subr.bf16.mxu0 0
        %1193 = vmatpush1.bf16.msra.mxu0 %v1170
        %1194 = vmatprep.subr.bf16.mxu0 0
        %1195 = vmatpush1.bf16.msra.mxu0 %v1171
        %1196 = vmatprep.subr.bf16.mxu0 0
        %1197 = vmatpush1.bf16.msra.mxu0 %v1172
        %1198 = vmatprep.subr.bf16.mxu0 0
        %1199 = vmatpush1.bf16.msra.mxu0 %v1173
        %1200 = vmatprep.subr.bf16.mxu0 0
        %1201 = vmatpush1.bf16.msra.mxu0 %v1174
        %1202 = vmatprep.subr.bf16.mxu0 0
        %1203 = vmatpush1.bf16.msra.mxu0 %v1175
        %1204 = vmatprep.subr.bf16.mxu0 0
        %1205 = vmatpush1.bf16.msra.mxu0 %v1176
        %1206 = vmatprep.subr.bf16.mxu0 0
        %1207 = vmatpush1.bf16.msra.mxu0 %v1177
        %1208 = vmatprep.subr.bf16.mxu0 0
        %1209 = vmatpush1.bf16.msra.mxu0 %v1178
        %1210 = vmatprep.subr.bf16.mxu0 0
        %1211 = vmatpush1.bf16.msra.mxu0 %v1179
        %1212 = vmatprep.mubr.bf16.mxu0 %v1157
        %1213 = vmatmul.mubr.bf16.gmra.mrb[0].mxu0 %v1156
        %v1214 = vpop.f32.mrb[0].mxu0
        %v1215 = vadd.f32 0.0, %v1214
        %v1216 = vpop.f32.mrb[0].mxu0
        %v1217 = vpop.f32.mrb[0].mxu0
        %v1218 = vadd.f32 0.0, %v1217
        %v1219 = vpop.f32.mrb[0].mxu0
        %1220 = vmatprep.mubr.bf16.mxu0 %v1159
        %1221 = vmatmul.mubr.bf16.gmra.mrb[0].mxu0 %v1158
        %v1222 = vpop.f32.mrb[0].mxu0
        %v1223 = vadd.f32 0.0, %v1222
        %v1224 = vpop.f32.mrb[0].mxu0
        %v1225 = vpop.f32.mrb[0].mxu0
        %v1226 = vadd.f32 0.0, %v1225
        %v1227 = vpop.f32.mrb[0].mxu0
        %1228 = vmatprep.mubr.bf16.mxu0 %v1161
        %1229 = vmatmul.mubr.bf16.gmra.mrb[0].mxu0 %v1160
        %v1230 = vpop.f32.mrb[0].mxu0
        %v1231 = vadd.f32 0.0, %v1230
        %v1232 = vpop.f32.mrb[0].mxu0
        %v1233 = vpop.f32.mrb[0].mxu0
        %v1234 = vadd.f32 0.0, %v1233
        %v1235 = vpop.f32.mrb[0].mxu0
        %1236 = vmatprep.mubr.bf16.mxu0 %v1163
        %1237 = vmatmul.mubr.bf16.gmra.mrb[0].mxu0 %v1162
        %v1238 = vpop.f32.mrb[0].mxu0
        %v1239 = vadd.f32 0.0, %v1238
        %v1240 = vpop.f32.mrb[0].mxu0
        %v1241 = vpop.f32.mrb[0].mxu0
        %v1242 = vadd.f32 0.0, %v1241
        %v1243 = vpop.f32.mrb[0].mxu0
        %1244 = vdwg.mxu0
        %s1245 = sld [smem:[#allocation4]]
        %v1246 = vstv %s1245
        %v1247 = vmul.f32 %v1246, %v1215
        %v1248 = vmul.f32 %v1246, %v1218
        %v1249 = vmul.f32 %v1246, %v1223
        %v1250 = vmul.f32 %v1246, %v1226
        %v1251 = vmul.f32 %v1246, %v1231
        %v1252 = vmul.f32 %v1246, %v1234
        %v1253 = vmul.f32 %v1246, %v1239
        %v1254 = vmul.f32 %v1246, %v1242
        %v1255 = vadd.f32 %v1247, %v783
        %v1256 = vadd.f32 %v1248, %v784
        %v1257 = vadd.f32 %v1249, %v785
        %v1258 = vadd.f32 %v1250, %v786
        %v1259 = vadd.f32 %v1251, %v787
        %v1260 = vadd.f32 %v1252, %v788
        %v1261 = vadd.f32 %v1253, %v789
        %v1262 = vadd.f32 %v1254, %v790
        %1263 = vst [vmem:[%s409] sm:$0xff] %v1255
        %1264 = vst [vmem:[%s409 + $0x8] sm:$0xff] %v1256
        %1265 = vst [vmem:[%s409 + $0x10] sm:$0xff] %v1257
        %1266 = vst [vmem:[%s409 + $0x18] sm:$0xff] %v1258
        %1267 = vst [vmem:[%s409 + $0x20] sm:$0xff] %v1259
        %1268 = vst [vmem:[%s409 + $0x28] sm:$0xff] %v1260
        %1269 = vst [vmem:[%s409 + $0x30] sm:$0xff] %v1261
        %1270 = vst [vmem:[%s409 + $0x38] sm:$0xff] %v1262
        %s1271 = sand.u32 %s211, 1
        %s1272 = scalar_lea.sflag [#allocation7], %s1271
        %s1273 = sand.u32 %s211, 1
        %s1274 = smul.addr %s1273, 64
        %s1275 = scalar_lea.vmem [#allocation16], %s1274
        // Predicated region
        $region84: #{tpu_custom_call.1} parent=47 // pred_check
          %p1276 = pneg %p221
        $region85: #{tpu_custom_call.1} parent=47 // pred_check_branch
          %1278 = sbr.rel (%p1276) target = $region87
        $region86: #{tpu_custom_call.1} parent=47 // pred_region
          %s1279 = smul.u32 8, %s35
          %s1281 = ssub.s32 1024, 1024
          %1282 = vsyncadd %s1272, %s1281
          %s1283 = smul.addr %s34, 32
          %s1284 = sadd.s32 %s1279, %s1283
          %s1285 = smul.addr %s1284, 128
          %s1286 = scalar_lea.hbm %s7, %s1285
          %s1287 = sshll.u32 %s1275, 4
          %s1288 = int_to_ptr.vmem [resolvable:$true] %s1287
          %1293 = dma.vmem_to_hbm [thread:$0]  %s1288, 1024, %s1286, %s1272, 128, 128, 8
        $region87: #{tpu_custom_call.1} parent=47 // pred_fallthru
          _
      $region48: #{tpu_custom_call.1} parent=5 // pred_fallthru
        _
      %p1294 = scmp.le.s32.totalorder 2, %s25
      // Predicated region
      $region88: #{tpu_custom_call.1} parent=5 // pred_check
        %p1295 = pneg %p1294
      $region89: #{tpu_custom_call.1} parent=5 // pred_check_branch
        %1297 = sbr.rel (%p1295) target = $region91
      $region90: #{tpu_custom_call.1} parent=5 // pred_region
        %s1298 = ssub.s32 %s25, 2
        // Predicated region
        $region92: #{tpu_custom_call.1} parent=90 // pred_check
          %p1299 = pneg %p227
        $region93: #{tpu_custom_call.1} parent=90 // pred_check_branch
          %1301 = sbr.rel (%p1299) target = $region95
        $region94: #{tpu_custom_call.1} parent=90 // pred_region
          %s1302 = sand.u32 %s212, 1
          %s1303 = scalar_lea.sflag [#allocation7], %s1302
          %s1304 = sand.u32 %s212, 1
          %s1305 = smul.addr %s1304, 64
          %s1306 = scalar_lea.vmem [#allocation16], %s1305
          %1307 = dma.done %s1303, 1024
        $region95: #{tpu_custom_call.1} parent=90 // pred_fallthru
          _
      $region91: #{tpu_custom_call.1} parent=5 // pred_fallthru
        _
    $region6: #{tpu_custom_call.1} parent=1 // loop_footer
      %s29 = sadd.s32 1, %s25
    $region7: #{tpu_custom_call.1} parent=1 // loop_footer_branch
      %24 = sbr.rel target = $region3
    $region8: #{tpu_custom_call.1} parent=1 // loop_exit
      _
    %1308 = vsyncpa [#allocation6], 1
    %s1309 = scalar_lea.sflag [#allocation6], 1
    %1310 = vsyncpa %s1309, 1
    %1311 = vsyncpa [#allocation9], 1
    %s1312 = scalar_lea.sflag [#allocation9], 1
    %1313 = vsyncpa %s1312, 1
    %1314 = vsyncpa [#allocation12], 1
    %1315 = vsyncpa [#allocation15], 1
    %1316 = vsyncpa [#allocation7], 1
    %s1317 = scalar_lea.sflag [#allocation7], 1
    %1318 = vsyncpa %s1317, 1

</llo_original>
